<compile_context>
chip_gen: v7x
topology: tpu7x:2x2x1
jax: 0.10.0
libtpu: 0.0.40
codegen_flags: <defaults>
</compile_context>

<pallas_src>
import functools

import jax
import jax.numpy as jnp
import numpy as np
from jax import lax
from jax.experimental import pallas as pl
from jax.experimental.pallas import tpu as pltpu

_SELU_ALPHA = 1.6732632423543772
_SELU_LAMBDA = 1.0507009873554805

# ---------------------------------------------------------------------------
# pltpu.roll direction probe (tiny one-off kernel, cached).
#   +1: pltpu.roll matches jnp.roll semantics
#   -1: rolls the opposite direction
#    0: unavailable -> fall back to slice+concat shifts (slow but correct)
# ---------------------------------------------------------------------------
_ROLL_MODE = None


def _roll_probe_kernel(x_ref, o_ref):
    o_ref[...] = pltpu.roll(x_ref[...], 3, 1)


def _probe_roll_mode():
    global _ROLL_MODE
    if _ROLL_MODE is not None:
        return _ROLL_MODE
    x = jnp.arange(8 * 256, dtype=jnp.float32).reshape(8, 256)
    mode = 0
    try:
        y = pl.pallas_call(
            _roll_probe_kernel,
            out_shape=jax.ShapeDtypeStruct((8, 256), jnp.float32))(x)
        y = np.asarray(jax.block_until_ready(y))
        xn = np.asarray(x)
        if np.array_equal(y, np.roll(xn, 3, axis=1)):
            mode = 1
        elif np.array_equal(y, np.roll(xn, -3, axis=1)):
            mode = -1
    except Exception:
        mode = 0
    _ROLL_MODE = mode
    return mode


# ---------------------------------------------------------------------------
# in-kernel helpers
# ---------------------------------------------------------------------------
def _selu(x):
    return _SELU_LAMBDA * jnp.where(
        x > 0, x, _SELU_ALPHA * (jnp.exp(jnp.minimum(x, 0.0)) - 1.0))


def _shift_flat(v, delta, n_lanes, roll_mode):
    """result[:, f] = v[:, (f + delta) % n_lanes]   (delta is a static int)."""
    s = (-delta) % n_lanes                  # equivalent jnp.roll shift
    if s == 0:
        return v
    if roll_mode == 1:                      # pltpu.roll == jnp.roll
        return pltpu.roll(v, s, 1)
    if roll_mode == -1:                     # pltpu.roll rolls the other way
        return pltpu.roll(v, n_lanes - s, 1)
    # fallback: explicit slice + concat (== jnp.roll(v, s, axis=1))
    return jnp.concatenate([v[:, n_lanes - s:], v[:, :n_lanes - s]], axis=1)


# ---------------------------------------------------------------------------
# kernel
# ---------------------------------------------------------------------------
def _pct_kernel(x_ref, m1_ref, md_ref,
                w3_ref, sh1_ref, wd1_ref, sh2_ref, wd2_ref, sh3_ref,
                s4_ref, sh4_ref, wmain_ref, sh5_ref, sh6_ref,
                wfc1t_ref, wfc2_ref, o_ref,
                *, H, W, c1, c, d, nIn, Nb, roll_mode, stack_taps):
    hw = H * W
    L = Nb * hw
    x = x_ref[...].astype(jnp.float32)        # (nIn, L) channels-first, lane-dense
    x2 = x[c1:, :]                            # (c, L)  TCA input (8-aligned slice)

    offs1 = [ky * W + kx for ky in (-1, 0, 1) for kx in (-1, 0, 1)]
    offsd = [ky * W + kx for ky in (-d, 0, d) for kx in (-d, 0, d)]

    # ---- TCA: 3x3 conv (pad 1) + BN + SELU
    if stack_taps:
        # single MXU matmul over 9 stacked taps (K = 9c); fine while 9c*L is small
        taps = []
        for t in range(9):
            tap = _shift_flat(x2, offs1[t], L, roll_mode)
            if t != 4:
                tap = tap * m1_ref[t]                       # precomputed mask
            taps.append(tap)
        pre = jnp.dot(w3_ref[...], jnp.concatenate(taps, axis=0),
                      preferred_element_type=jnp.float32)
    else:
        # per-tap accumulate: peak activation ~1/9 of the stacked form (v7x VMEM)
        pre = jnp.zeros((c, L), jnp.float32)
        for t in range(9):
            tap = _shift_flat(x2, offs1[t], L, roll_mode)
            if t != 4:
                tap = tap * m1_ref[t]
            pre = pre + jnp.dot(w3_ref[t], tap,
                                preferred_element_type=jnp.float32)
    b = _selu(pre + sh1_ref[...])                           # (c, L)

    # ---- TCA: depthwise 3x3 (pad 1) + dilated depthwise 3x3 (pad d, dil d)
    # taps generated and consumed one at a time; weights loaded per tap (sublane)
    acc1 = jnp.zeros((c, L), jnp.float32)
    acc2 = jnp.zeros((c, L), jnp.float32)
    for t in range(9):
        tap1 = _shift_flat(b, offs1[t], L, roll_mode)
        if t != 4:
            tap1 = tap1 * m1_ref[t]
        acc1 = acc1 + wd1_ref[t] * tap1                     # wd1_ref[t]: (c, 1)
        if d == 1:
            tapd = tap1
        else:
            tapd = _shift_flat(b, offsd[t], L, roll_mode)
            if t != 4:
                tapd = tapd * md_ref[t]
        acc2 = acc2 + wd2_ref[t] * tapd
    b1 = _selu(acc1 + sh2_ref[...])
    b2 = _selu(acc2 + sh3_ref[...])

    # ---- TCA output: BN + SELU over the residual sum
    y_t = _selu(s4_ref[...] * (b + b1 + b2) + sh4_ref[...])  # (c, L)

    # ---- main path: conv1x1(cat(x1, y_t)) and res_conv(x) fused in ONE matmul.
    # (At realistic M,K >= 128 split into w5_x1@x1 + w5_y@y_t and wr@x instead.)
    z = jnp.concatenate([x, y_t], axis=0)                     # (nIn + c, L)
    main = jnp.dot(wmain_ref[...], z,
                   preferred_element_type=jnp.float32)        # (2*nIn, L)
    y = _selu(main[:nIn, :] + sh5_ref[...])
    res = main[nIn:, :] + sh6_ref[...]
    out = jnp.maximum(y + res, 0.0)                           # (nIn, L)

    # ---- SE channel gate per image, off the MXU:
    # pooled -> FC1 -> ReLU -> FC2 -> sigmoid via VPU multiplies + tiny reduces
    wfc1t = wfc1t_ref[...]                                    # (nIn, hidden)
    wfc2 = wfc2_ref[...]                                      # (nIn, hidden)
    inv_hw = 1.0 / hw
    for img in range(Nb):
        seg = out[:, img * hw:(img + 1) * hw]                 # (nIn, hw)
        pooled = jnp.sum(seg, axis=1, keepdims=True) * inv_hw # (nIn, 1)
        h1 = jnp.maximum(
            jnp.sum(wfc1t * pooled, axis=0, keepdims=True), 0.0)  # (1, hidden)
        g = jnp.sum(wfc2 * h1, axis=1, keepdims=True)             # (nIn, 1)
        gate = 1.0 / (1.0 + jnp.exp(-g))
        o_ref[:, img * hw:(img + 1) * hw] = (seg * gate).astype(o_ref.dtype)


# ---------------------------------------------------------------------------
# wrapper
# ---------------------------------------------------------------------------
def pct_residual_se_pallas(x_nchw, folded, *, c1, c, d, max_lanes=8192):
    N, nIn, H, W = x_nchw.shape
    hw = H * W
    roll_mode = _probe_roll_mode()

    # Lane-batch: largest divisor Nb of N with Nb*hw lanes within a small budget
    # (amortizes per-step overhead; widens every matmul's N dimension).
    Nb = 1
    for cand in range(min(N, max(1, max_lanes // hw)), 0, -1):
        if N % cand == 0:
            Nb = cand
            break
    L = Nb * hw

    # channels-first, images concatenated along the lane axis
    x_cf = jnp.transpose(x_nchw, (1, 0, 2, 3)).reshape(nIn, N * hw)

    # Boundary masks (periodic per image) precomputed once for dilation 1 and d.
    def build_masks(dd):
        f = np.arange(L, dtype=np.int64) % hw
        row, col = f // W, f % W
        m = np.ones((9, 1, L), np.float32)
        t = 0
        for ky in (-dd, 0, dd):
            for kx in (-dd, 0, dd):
                ok = ((row + ky >= 0) & (row + ky < H) &
                      (col + kx >= 0) & (col + kx < W))
                m[t, 0, :] = ok
                t += 1
        return jnp.asarray(m)

    mask1 = build_masks(1)
    maskd = mask1 if d == 1 else build_masks(d)

    # 3x3 conv weight layout: single stacked matmul while the 9-tap stack is
    # tiny; per-tap accumulate once it would pressure VMEM (v7x 64 MiB).
    w3_taps = folded[0]                                  # (9, c, c) tap-major
    stack_taps = (9 * c * L * 4) <= (4 << 20)
    w3 = (jnp.transpose(w3_taps, (1, 0, 2)).reshape(c, 9 * c)
          if stack_taps else w3_taps)
    params = (w3,) + tuple(folded[1:])

    # NOTE: c1 and nIn should be multiples of 8 (f32 sublane) so the x2 and
    # main[:nIn]/main[nIn:] slices are free; other splits work but relayout.
    kernel = functools.partial(_pct_kernel, H=H, W=W, c1=c1, c=c, d=d,
                               nIn=nIn, Nb=Nb, roll_mode=roll_mode,
                               stack_taps=stack_taps)

    def _full(a):
        nd = a.ndim
        return pl.BlockSpec(a.shape, lambda n, _nd=nd: (0,) * _nd)

    in_specs = ([pl.BlockSpec((nIn, L), lambda n: (0, n)),
                 _full(mask1), _full(maskd)]
                + [_full(p) for p in params])

    grid_spec = pltpu.PrefetchScalarGridSpec(
        num_scalar_prefetch=0,
        grid=(N // Nb,),
        in_specs=in_specs,
        out_specs=pl.BlockSpec((nIn, L), lambda n: (0, n)),
    )
    out_cf = pl.pallas_call(
        kernel,
        out_shape=jax.ShapeDtypeStruct((nIn, N * hw), x_nchw.dtype),
        grid_spec=grid_spec,
        compiler_params=pltpu.CompilerParams(
            dimension_semantics=("parallel",)),     # image blocks are independent
    )(x_cf, mask1, maskd, *params)
    return jnp.transpose(out_cf.reshape(nIn, N, H, W), (1, 0, 2, 3))


# ---------------------------------------------------------------------------
# synthetic parameters + BN folding (eval-mode BatchNorm)
# ---------------------------------------------------------------------------
def init_raw_params(key, nIn, c, hidden):
    ks = jax.random.split(key, 8)
    raw = dict(
        w3=0.15 * jax.random.normal(ks[0], (c, c, 3, 3), jnp.float32),
        wd1=0.3 * jax.random.normal(ks[1], (c, 1, 3, 3), jnp.float32),
        wd2=0.3 * jax.random.normal(ks[2], (c, 1, 3, 3), jnp.float32),
        w5=0.2 * jax.random.normal(ks[3], (nIn, nIn, 1, 1), jnp.float32),
        wr=0.2 * jax.random.normal(ks[4], (nIn, nIn, 1, 1), jnp.float32),
        wfc1=0.3 * jax.random.normal(ks[5], (hidden, nIn), jnp.float32),
        wfc2=0.3 * jax.random.normal(ks[6], (nIn, hidden), jnp.float32),
    )

    def bn(kk, n):
        k1, k2, k3, k4 = jax.random.split(kk, 4)
        gamma = 1.0 + 0.1 * jax.random.normal(k1, (n,), jnp.float32)
        beta = 0.1 * jax.random.normal(k2, (n,), jnp.float32)
        mean = 0.1 * jax.random.normal(k3, (n,), jnp.float32)
        var = 0.5 + jax.random.uniform(k4, (n,), jnp.float32)
        return gamma, beta, mean, var

    bnk = jax.random.split(ks[7], 6)
    raw["bn1"] = bn(bnk[0], c)      # TCA conv3x3 BN  (eps 1e-3)
    raw["bn2"] = bn(bnk[1], c)      # TCA dconv3x3 BN (eps 1e-3)
    raw["bn3"] = bn(bnk[2], c)      # TCA ddconv3x3 BN(eps 1e-3)
    raw["bn4"] = bn(bnk[3], c)      # TCA bp BN       (eps 1e-3)
    raw["bn5"] = bn(bnk[4], nIn)    # conv1x1 BN      (eps 1e-3)
    raw["bn6"] = bn(bnk[5], nIn)    # res_bn          (eps 1e-5)
    return raw


def fold_params(raw, nIn, c1, c):
    def fold(bnp, eps):
        g, b, m, v = bnp
        s = g / jnp.sqrt(v + eps)
        return s, b - m * s

    s1, t1 = fold(raw["bn1"], 1e-3)
    s2, t2 = fold(raw["bn2"], 1e-3)
    s3, t3 = fold(raw["bn3"], 1e-3)
    s4, t4 = fold(raw["bn4"], 1e-3)
    s5, t5 = fold(raw["bn5"], 1e-3)
    s6, t6 = fold(raw["bn6"], 1e-5)

    # 3x3 conv weight (O,I,kh,kw) -> tap-major (9, O, I); BN1 scale folded in.
    w3_taps = jnp.transpose(raw["w3"], (2, 3, 0, 1)).reshape(9, c, c) \
        * s1[None, :, None]
    # Depthwise weights tap-major (9, c, 1): kernel does a static sublane-indexed
    # load per tap instead of a lane extract + broadcast.
    wd1f = jnp.transpose(s2[:, None] * raw["wd1"].reshape(c, 9))[:, :, None]
    wd2f = jnp.transpose(s3[:, None] * raw["wd2"].reshape(c, 9))[:, :, None]

    w5 = s5[:, None] * raw["w5"][:, :, 0, 0]          # conv1x1, BN5 folded
    wr = s6[:, None] * raw["wr"][:, :, 0, 0]          # res_conv, BN6 folded
    # Fused main weight applied to Z = concat([x1, x2, y_tca]) (rows of Z):
    #   rows   0..nIn  -> conv1x1(cat(x1, y_tca))  (zeros over the x2 columns)
    #   rows nIn..2nIn -> res_conv(x)              (zeros over the y_tca columns)
    wmain = jnp.concatenate([
        jnp.concatenate([w5[:, :c1],
                         jnp.zeros((nIn, nIn - c1), jnp.float32),
                         w5[:, c1:]], axis=1),
        jnp.concatenate([wr, jnp.zeros((nIn, c), jnp.float32)], axis=1),
    ], axis=0)                                        # (2*nIn, nIn + c)

    col = lambda v: v[:, None]
    return (w3_taps, col(t1), wd1f, col(t2), wd2f, col(t3),
            col(s4), col(t4), wmain, col(t5), col(t6),
            jnp.transpose(raw["wfc1"]),               # (nIn, hidden)
            raw["wfc2"])                              # (nIn, hidden)


# ---------------------------------------------------------------------------
# pure-JAX reference (mirrors the PyTorch module, eval-mode BN)
# ---------------------------------------------------------------------------
def pct_residual_se_ref(x, raw, *, c1, c, d):
    dn = ("NCHW", "OIHW", "NCHW")
    hp = lax.Precision.HIGHEST

    def conv(v, w, pad, dil=1, groups=1):
        return lax.conv_general_dilated(
            v, w, (1, 1), ((pad, pad), (pad, pad)), rhs_dilation=(dil, dil),
            dimension_numbers=dn, feature_group_count=groups, precision=hp)

    def bn(v, bnp, eps):
        g, b, m, var = bnp
        s = g / jnp.sqrt(var + eps)
        return v * s[None, :, None, None] + (b - m * s)[None, :, None, None]

    selu = jax.nn.selu
    x1, x2 = x[:, :c1], x[:, c1:]
    b_ = selu(bn(conv(x2, raw["w3"], 1), raw["bn1"], 1e-3))
    b1 = selu(bn(conv(b_, raw["wd1"], 1, 1, groups=c), raw["bn2"], 1e-3))
    b2 = selu(bn(conv(b_, raw["wd2"], d, d, groups=c), raw["bn3"], 1e-3))
    y_t = selu(bn(b_ + b1 + b2, raw["bn4"], 1e-3))
    y = selu(bn(conv(jnp.concatenate([x1, y_t], axis=1), raw["w5"], 0),
                raw["bn5"], 1e-3))
    res = bn(conv(x, raw["wr"], 0), raw["bn6"], 1e-5)
    out = jnp.maximum(y + res, 0.0)
    pooled = out.mean(axis=(2, 3))                                   # (N, nIn)
    h = jnp.maximum(jnp.dot(pooled, raw["wfc1"].T, precision=hp), 0.0)
    gate = jax.nn.sigmoid(jnp.dot(h, raw["wfc2"].T, precision=hp))
    return out * gate[:, :, None, None]


if __name__ == "__main__":
    # PCT_residual_SE(nIn=16, d=2, p=0.5, se_red=4) on a (2, 16, 16, 16) NCHW input.
    nIn, d, p, se_red = 16, 2, 0.5, 4
    N, H, W = 2, 16, 16
    c1 = round(nIn * (1 - p))       # identity-split channels (x1)
    c = nIn - c1                    # TCA channels (x2)
    hidden = nIn // se_red          # SE bottleneck width

    key = jax.random.PRNGKey(0)
    kx, kp = jax.random.split(key)
    x = jax.random.normal(kx, (N, nIn, H, W), jnp.float32)

    raw = init_raw_params(kp, nIn, c, hidden)
    folded = fold_params(raw, nIn, c1, c)

    out = pct_residual_se_pallas(x, folded, c1=c1, c=c, d=d)
    out = jax.block_until_ready(out)

    ref = pct_residual_se_ref(x, raw, c1=c1, c=c, d=d)
    np.testing.assert_allclose(np.asarray(out), np.asarray(ref),
                               rtol=1e-3, atol=1e-4)
    print("KERNEL_OK")
</pallas_src>

<mosaic_0001>
module attributes {stable_mosaic.version = 11 : i64} {
  func.func @_roll_probe_kernel(%arg0: memref<8x256xf32, #tpu.memory_space<vmem>>, %arg1: memref<8x256xf32, #tpu.memory_space<vmem>>) attributes {dimension_semantics = [], scalar_prefetch = 0 : i64, scratch_operands = 0 : i64, tpu.core_type = #tpu.core_type<tc>} {
    %c0 = arith.constant 0 : index
    %c0_0 = arith.constant 0 : index
    %0 = vector.load %arg0[%c0, %c0_0] : memref<8x256xf32, #tpu.memory_space<vmem>>, vector<8x256xf32>
    %c3_i32 = arith.constant 3 : i32
    %1 = tpu.dynamic_rotate %0 by %c3_i32 dim 1 : vector<8x256xf32>, i32 -> vector<8x256xf32>
    %c0_1 = arith.constant 0 : index
    %c0_2 = arith.constant 0 : index
    %2 = vector.load %arg1[%c0_1, %c0_2] : memref<8x256xf32, #tpu.memory_space<vmem>>, vector<8x256xf32>
    tpu.vector_store %arg1[%c0_1, %c0_2], %1 {strides = array<i32>} : memref<8x256xf32, #tpu.memory_space<vmem>>, vector<8x256xf32>,
    return
  }
}

module attributes {stable_mosaic.version = 11 : i64} {
  func.func @_pct_kernel(%arg0: i32, %arg1: memref<16x512xf32, #tpu.memory_space<vmem>>, %arg2: memref<9x1x512xf32, #tpu.memory_space<vmem>>, %arg3: memref<9x1x512xf32, #tpu.memory_space<vmem>>, %arg4: memref<8x72xf32, #tpu.memory_space<vmem>>, %arg5: memref<8x1xf32, #tpu.memory_space<vmem>>, %arg6: memref<9x8x1xf32, #tpu.memory_space<vmem>>, %arg7: memref<8x1xf32, #tpu.memory_space<vmem>>, %arg8: memref<9x8x1xf32, #tpu.memory_space<vmem>>, %arg9: memref<8x1xf32, #tpu.memory_space<vmem>>, %arg10: memref<8x1xf32, #tpu.memory_space<vmem>>, %arg11: memref<8x1xf32, #tpu.memory_space<vmem>>, %arg12: memref<32x24xf32, #tpu.memory_space<vmem>>, %arg13: memref<16x1xf32, #tpu.memory_space<vmem>>, %arg14: memref<16x1xf32, #tpu.memory_space<vmem>>, %arg15: memref<16x4xf32, #tpu.memory_space<vmem>>, %arg16: memref<16x4xf32, #tpu.memory_space<vmem>>, %arg17: memref<16x512xf32, #tpu.memory_space<vmem>>) attributes {dimension_semantics = [#tpu.dimension_semantics<parallel>], iteration_bounds = array<i64: 1>, scalar_prefetch = 0 : i64, scratch_operands = 0 : i64, tpu.core_type = #tpu.core_type<tc>, window_params = [{transform_indices = @transform_0, window_bounds = array<i64: 16, 512>}, {pipeline_mode = #tpu.pipeline_mode<synchronous>, transform_indices = @transform_1, window_bounds = array<i64: 9, 1, 512>}, {pipeline_mode = #tpu.pipeline_mode<synchronous>, transform_indices = @transform_2, window_bounds = array<i64: 9, 1, 512>}, {pipeline_mode = #tpu.pipeline_mode<synchronous>, transform_indices = @transform_3, window_bounds = array<i64: 8, 72>}, {pipeline_mode = #tpu.pipeline_mode<synchronous>, transform_indices = @transform_4, window_bounds = array<i64: 8, 1>}, {pipeline_mode = #tpu.pipeline_mode<synchronous>, transform_indices = @transform_5, window_bounds = array<i64: 9, 8, 1>}, {pipeline_mode = #tpu.pipeline_mode<synchronous>, transform_indices = @transform_6, window_bounds = array<i64: 8, 1>}, {pipeline_mode = #tpu.pipeline_mode<synchronous>, transform_indices = @transform_7, window_bounds = array<i64: 9, 8, 1>}, {pipeline_mode = #tpu.pipeline_mode<synchronous>, transform_indices = @transform_8, window_bounds = array<i64: 8, 1>}, {pipeline_mode = #tpu.pipeline_mode<synchronous>, transform_indices = @transform_9, window_bounds = array<i64: 8, 1>}, {pipeline_mode = #tpu.pipeline_mode<synchronous>, transform_indices = @transform_10, window_bounds = array<i64: 8, 1>}, {pipeline_mode = #tpu.pipeline_mode<synchronous>, transform_indices = @transform_11, window_bounds = array<i64: 32, 24>}, {pipeline_mode = #tpu.pipeline_mode<synchronous>, transform_indices = @transform_12, window_bounds = array<i64: 16, 1>}, {pipeline_mode = #tpu.pipeline_mode<synchronous>, transform_indices = @transform_13, window_bounds = array<i64: 16, 1>}, {pipeline_mode = #tpu.pipeline_mode<synchronous>, transform_indices = @transform_14, window_bounds = array<i64: 16, 4>}, {pipeline_mode = #tpu.pipeline_mode<synchronous>, transform_indices = @transform_15, window_bounds = array<i64: 16, 4>}, {transform_indices = @transform_16, window_bounds = array<i64: 16, 512>}]} {
    %c0 = arith.constant 0 : index
    %c0_0 = arith.constant 0 : index
    %0 = vector.load %arg1[%c0, %c0_0] : memref<16x512xf32, #tpu.memory_space<vmem>>, vector<16x512xf32>
    %1 = vector.extract_strided_slice %0 {offsets = [8, 0], sizes = [8, 512], strides = [1, 1]} : vector<16x512xf32> to vector<8x512xf32>
    %2 = vector.extract_strided_slice %1 {offsets = [0, 495], sizes = [8, 17], strides = [1, 1]} : vector<8x512xf32> to vector<8x17xf32>
    %3 = vector.extract_strided_slice %1 {offsets = [0, 0], sizes = [8, 495], strides = [1, 1]} : vector<8x512xf32> to vector<8x495xf32>
    %4 = tpu.concatenate %2, %3 in 1 : vector<8x17xf32>, vector<8x495xf32> -> vector<8x512xf32>
    %c0_1 = arith.constant 0 : index
    %c0_2 = arith.constant 0 : index
    %c0_3 = arith.constant 0 : index
    %5 = vector.load %arg2[%c0_1, %c0_2, %c0_3] : memref<9x1x512xf32, #tpu.memory_space<vmem>>, vector<1x1x512xf32>
    %6 = vector.shape_cast %5 : vector<1x1x512xf32> to vector<1x512xf32>
    %7 = vector.broadcast %6 : vector<1x512xf32> to vector<8x512xf32>
    %8 = arith.mulf %4, %7 : vector<8x512xf32>
    %9 = vector.extract_strided_slice %1 {offsets = [0, 496], sizes = [8, 16], strides = [1, 1]} : vector<8x512xf32> to vector<8x16xf32>
    %10 = vector.extract_strided_slice %1 {offsets = [0, 0], sizes = [8, 496], strides = [1, 1]} : vector<8x512xf32> to vector<8x496xf32>
    %11 = tpu.concatenate %9, %10 in 1 : vector<8x16xf32>, vector<8x496xf32> -> vector<8x512xf32>
    %c1 = arith.constant 1 : index
    %c0_4 = arith.constant 0 : index
    %c0_5 = arith.constant 0 : index
    %12 = vector.load %arg2[%c1, %c0_4, %c0_5] : memref<9x1x512xf32, #tpu.memory_space<vmem>>, vector<1x1x512xf32>
    %13 = vector.shape_cast %12 : vector<1x1x512xf32> to vector<1x512xf32>
    %14 = vector.broadcast %13 : vector<1x512xf32> to vector<8x512xf32>
    %15 = arith.mulf %11, %14 : vector<8x512xf32>
    %16 = vector.extract_strided_slice %1 {offsets = [0, 497], sizes = [8, 15], strides = [1, 1]} : vector<8x512xf32> to vector<8x15xf32>
    %17 = vector.extract_strided_slice %1 {offsets = [0, 0], sizes = [8, 497], strides = [1, 1]} : vector<8x512xf32> to vector<8x497xf32>
    %18 = tpu.concatenate %16, %17 in 1 : vector<8x15xf32>, vector<8x497xf32> -> vector<8x512xf32>
    %c2 = arith.constant 2 : index
    %c0_6 = arith.constant 0 : index
    %c0_7 = arith.constant 0 : index
    %19 = vector.load %arg2[%c2, %c0_6, %c0_7] : memref<9x1x512xf32, #tpu.memory_space<vmem>>, vector<1x1x512xf32>
    %20 = vector.shape_cast %19 : vector<1x1x512xf32> to vector<1x512xf32>
    %21 = vector.broadcast %20 : vector<1x512xf32> to vector<8x512xf32>
    %22 = arith.mulf %18, %21 : vector<8x512xf32>
    %23 = vector.extract_strided_slice %1 {offsets = [0, 511], sizes = [8, 1], strides = [1, 1]} : vector<8x512xf32> to vector<8x1xf32>
    %24 = vector.extract_strided_slice %1 {offsets = [0, 0], sizes = [8, 511], strides = [1, 1]} : vector<8x512xf32> to vector<8x511xf32>
    %25 = tpu.concatenate %23, %24 in 1 : vector<8x1xf32>, vector<8x511xf32> -> vector<8x512xf32>
    %c3 = arith.constant 3 : index
    %c0_8 = arith.constant 0 : index
    %c0_9 = arith.constant 0 : index
    %26 = vector.load %arg2[%c3, %c0_8, %c0_9] : memref<9x1x512xf32, #tpu.memory_space<vmem>>, vector<1x1x512xf32>
    %27 = vector.shape_cast %26 : vector<1x1x512xf32> to vector<1x512xf32>
    %28 = vector.broadcast %27 : vector<1x512xf32> to vector<8x512xf32>
    %29 = arith.mulf %25, %28 : vector<8x512xf32>
    %30 = vector.extract_strided_slice %1 {offsets = [0, 1], sizes = [8, 511], strides = [1, 1]} : vector<8x512xf32> to vector<8x511xf32>
    %31 = vector.extract_strided_slice %1 {offsets = [0, 0], sizes = [8, 1], strides = [1, 1]} : vector<8x512xf32> to vector<8x1xf32>
    %32 = tpu.concatenate %30, %31 in 1 : vector<8x511xf32>, vector<8x1xf32> -> vector<8x512xf32>
    %c5 = arith.constant 5 : index
    %c0_10 = arith.constant 0 : index
    %c0_11 = arith.constant 0 : index
    %33 = vector.load %arg2[%c5, %c0_10, %c0_11] : memref<9x1x512xf32, #tpu.memory_space<vmem>>, vector<1x1x512xf32>
    %34 = vector.shape_cast %33 : vector<1x1x512xf32> to vector<1x512xf32>
    %35 = vector.broadcast %34 : vector<1x512xf32> to vector<8x512xf32>
    %36 = arith.mulf %32, %35 : vector<8x512xf32>
    %37 = vector.extract_strided_slice %1 {offsets = [0, 15], sizes = [8, 497], strides = [1, 1]} : vector<8x512xf32> to vector<8x497xf32>
    %38 = vector.extract_strided_slice %1 {offsets = [0, 0], sizes = [8, 15], strides = [1, 1]} : vector<8x512xf32> to vector<8x15xf32>
    %39 = tpu.concatenate %37, %38 in 1 : vector<8x497xf32>, vector<8x15xf32> -> vector<8x512xf32>
    %c6 = arith.constant 6 : index
    %c0_12 = arith.constant 0 : index
    %c0_13 = arith.constant 0 : index
    %40 = vector.load %arg2[%c6, %c0_12, %c0_13] : memref<9x1x512xf32, #tpu.memory_space<vmem>>, vector<1x1x512xf32>
    %41 = vector.shape_cast %40 : vector<1x1x512xf32> to vector<1x512xf32>
    %42 = vector.broadcast %41 : vector<1x512xf32> to vector<8x512xf32>
    %43 = arith.mulf %39, %42 : vector<8x512xf32>
    %44 = vector.extract_strided_slice %1 {offsets = [0, 16], sizes = [8, 496], strides = [1, 1]} : vector<8x512xf32> to vector<8x496xf32>
    %45 = vector.extract_strided_slice %1 {offsets = [0, 0], sizes = [8, 16], strides = [1, 1]} : vector<8x512xf32> to vector<8x16xf32>
    %46 = tpu.concatenate %44, %45 in 1 : vector<8x496xf32>, vector<8x16xf32> -> vector<8x512xf32>
    %c7 = arith.constant 7 : index
    %c0_14 = arith.constant 0 : index
    %c0_15 = arith.constant 0 : index
    %47 = vector.load %arg2[%c7, %c0_14, %c0_15] : memref<9x1x512xf32, #tpu.memory_space<vmem>>, vector<1x1x512xf32>
    %48 = vector.shape_cast %47 : vector<1x1x512xf32> to vector<1x512xf32>
    %49 = vector.broadcast %48 : vector<1x512xf32> to vector<8x512xf32>
    %50 = arith.mulf %46, %49 : vector<8x512xf32>
    %51 = vector.extract_strided_slice %1 {offsets = [0, 17], sizes = [8, 495], strides = [1, 1]} : vector<8x512xf32> to vector<8x495xf32>
    %52 = vector.extract_strided_slice %1 {offsets = [0, 0], sizes = [8, 17], strides = [1, 1]} : vector<8x512xf32> to vector<8x17xf32>
    %53 = tpu.concatenate %51, %52 in 1 : vector<8x495xf32>, vector<8x17xf32> -> vector<8x512xf32>
    %c8 = arith.constant 8 : index
    %c0_16 = arith.constant 0 : index
    %c0_17 = arith.constant 0 : index
    %54 = vector.load %arg2[%c8, %c0_16, %c0_17] : memref<9x1x512xf32, #tpu.memory_space<vmem>>, vector<1x1x512xf32>
    %55 = vector.shape_cast %54 : vector<1x1x512xf32> to vector<1x512xf32>
    %56 = vector.broadcast %55 : vector<1x512xf32> to vector<8x512xf32>
    %57 = arith.mulf %53, %56 : vector<8x512xf32>
    %c0_18 = arith.constant 0 : index
    %c0_19 = arith.constant 0 : index
    %58 = vector.load %arg4[%c0_18, %c0_19] : memref<8x72xf32, #tpu.memory_space<vmem>>, vector<8x72xf32>
    %59 = tpu.concatenate %8, %15, %22, %29, %1, %36, %43, %50, %57 in 0 : vector<8x512xf32>, vector<8x512xf32>, vector<8x512xf32>, vector<8x512xf32>, vector<8x512xf32>, vector<8x512xf32>, vector<8x512xf32>, vector<8x512xf32>, vector<8x512xf32> -> vector<72x512xf32>
    %cst = arith.constant dense<0.000000e+00> : vector<8x512xf32>
    %60 = tpu.matmul %58, %59, %cst {dimension_numbers = #tpu.dot_dimension_numbers<[1], [0], [0], [1], [0, 0, 1, 1], [], []>} : vector<8x72xf32>, vector<72x512xf32>, vector<8x512xf32> -> vector<8x512xf32>
    %c0_20 = arith.constant 0 : index
    %c0_21 = arith.constant 0 : index
    %61 = vector.load %arg5[%c0_20, %c0_21] : memref<8x1xf32, #tpu.memory_space<vmem>>, vector<8x1xf32>
    %62 = vector.broadcast %61 : vector<8x1xf32> to vector<8x512xf32>
    %63 = arith.addf %60, %62 : vector<8x512xf32>
    %cst_22 = arith.constant 0.000000e+00 : f32
    %64 = vector.broadcast %cst_22 : f32 to vector<8x512xf32>
    %65 = arith.cmpf ogt, %63, %64 : vector<8x512xf32>
    %cst_23 = arith.constant 0.000000e+00 : f32
    %66 = vector.broadcast %cst_23 : f32 to vector<8x512xf32>
    %67 = arith.minimumf %63, %66 : vector<8x512xf32>
    %68 = math.exp %67 : vector<8x512xf32>
    %cst_24 = arith.constant 1.000000e+00 : f32
    %69 = vector.broadcast %cst_24 : f32 to vector<8x512xf32>
    %70 = arith.subf %68, %69 : vector<8x512xf32>
    %cst_25 = arith.constant 1.67326319 : f32
    %71 = vector.broadcast %cst_25 : f32 to vector<8x512xf32>
    %72 = arith.mulf %71, %70 : vector<8x512xf32>
    %73 = arith.select %65, %63, %72 : vector<8x512xi1>, vector<8x512xf32>
    %cst_26 = arith.constant 1.05070102 : f32
    %74 = vector.broadcast %cst_26 : f32 to vector<8x512xf32>
    %75 = arith.mulf %74, %73 : vector<8x512xf32>
    %cst_27 = arith.constant 0.000000e+00 : f32
    %76 = vector.broadcast %cst_27 : f32 to vector<8x512xf32>
    %cst_28 = arith.constant 0.000000e+00 : f32
    %77 = vector.broadcast %cst_28 : f32 to vector<8x512xf32>
    %78 = vector.extract_strided_slice %75 {offsets = [0, 495], sizes = [8, 17], strides = [1, 1]} : vector<8x512xf32> to vector<8x17xf32>
    %79 = vector.extract_strided_slice %75 {offsets = [0, 0], sizes = [8, 495], strides = [1, 1]} : vector<8x512xf32> to vector<8x495xf32>
    %80 = tpu.concatenate %78, %79 in 1 : vector<8x17xf32>, vector<8x495xf32> -> vector<8x512xf32>
    %c0_29 = arith.constant 0 : index
    %c0_30 = arith.constant 0 : index
    %c0_31 = arith.constant 0 : index
    %81 = vector.load %arg2[%c0_29, %c0_30, %c0_31] : memref<9x1x512xf32, #tpu.memory_space<vmem>>, vector<1x1x512xf32>
    %82 = vector.shape_cast %81 : vector<1x1x512xf32> to vector<1x512xf32>
    %83 = vector.broadcast %82 : vector<1x512xf32> to vector<8x512xf32>
    %84 = arith.mulf %80, %83 : vector<8x512xf32>
    %c0_32 = arith.constant 0 : index
    %c0_33 = arith.constant 0 : index
    %c0_34 = arith.constant 0 : index
    %85 = vector.load %arg6[%c0_32, %c0_33, %c0_34] : memref<9x8x1xf32, #tpu.memory_space<vmem>>, vector<1x8x1xf32>
    %86 = vector.shape_cast %85 : vector<1x8x1xf32> to vector<8x1xf32>
    %87 = vector.broadcast %86 : vector<8x1xf32> to vector<8x512xf32>
    %88 = arith.mulf %87, %84 : vector<8x512xf32>
    %89 = arith.addf %76, %88 : vector<8x512xf32>
    %90 = vector.extract_strided_slice %75 {offsets = [0, 478], sizes = [8, 34], strides = [1, 1]} : vector<8x512xf32> to vector<8x34xf32>
    %91 = vector.extract_strided_slice %75 {offsets = [0, 0], sizes = [8, 478], strides = [1, 1]} : vector<8x512xf32> to vector<8x478xf32>
    %92 = tpu.concatenate %90, %91 in 1 : vector<8x34xf32>, vector<8x478xf32> -> vector<8x512xf32>
    %c0_35 = arith.constant 0 : index
    %c0_36 = arith.constant 0 : index
    %c0_37 = arith.constant 0 : index
    %93 = vector.load %arg3[%c0_35, %c0_36, %c0_37] : memref<9x1x512xf32, #tpu.memory_space<vmem>>, vector<1x1x512xf32>
    %94 = vector.shape_cast %93 : vector<1x1x512xf32> to vector<1x512xf32>
    %95 = vector.broadcast %94 : vector<1x512xf32> to vector<8x512xf32>
    %96 = arith.mulf %92, %95 : vector<8x512xf32>
    %c0_38 = arith.constant 0 : index
    %c0_39 = arith.constant 0 : index
    %c0_40 = arith.constant 0 : index
    %97 = vector.load %arg8[%c0_38, %c0_39, %c0_40] : memref<9x8x1xf32, #tpu.memory_space<vmem>>, vector<1x8x1xf32>
    %98 = vector.shape_cast %97 : vector<1x8x1xf32> to vector<8x1xf32>
    %99 = vector.broadcast %98 : vector<8x1xf32> to vector<8x512xf32>
    %100 = arith.mulf %99, %96 : vector<8x512xf32>
    %101 = arith.addf %77, %100 : vector<8x512xf32>
    %102 = vector.extract_strided_slice %75 {offsets = [0, 496], sizes = [8, 16], strides = [1, 1]} : vector<8x512xf32> to vector<8x16xf32>
    %103 = vector.extract_strided_slice %75 {offsets = [0, 0], sizes = [8, 496], strides = [1, 1]} : vector<8x512xf32> to vector<8x496xf32>
    %104 = tpu.concatenate %102, %103 in 1 : vector<8x16xf32>, vector<8x496xf32> -> vector<8x512xf32>
    %c1_41 = arith.constant 1 : index
    %c0_42 = arith.constant 0 : index
    %c0_43 = arith.constant 0 : index
    %105 = vector.load %arg2[%c1_41, %c0_42, %c0_43] : memref<9x1x512xf32, #tpu.memory_space<vmem>>, vector<1x1x512xf32>
    %106 = vector.shape_cast %105 : vector<1x1x512xf32> to vector<1x512xf32>
    %107 = vector.broadcast %106 : vector<1x512xf32> to vector<8x512xf32>
    %108 = arith.mulf %104, %107 : vector<8x512xf32>
    %c1_44 = arith.constant 1 : index
    %c0_45 = arith.constant 0 : index
    %c0_46 = arith.constant 0 : index
    %109 = vector.load %arg6[%c1_44, %c0_45, %c0_46] : memref<9x8x1xf32, #tpu.memory_space<vmem>>, vector<1x8x1xf32>
    %110 = vector.shape_cast %109 : vector<1x8x1xf32> to vector<8x1xf32>
    %111 = vector.broadcast %110 : vector<8x1xf32> to vector<8x512xf32>
    %112 = arith.mulf %111, %108 : vector<8x512xf32>
    %113 = arith.addf %89, %112 : vector<8x512xf32>
    %114 = vector.extract_strided_slice %75 {offsets = [0, 480], sizes = [8, 32], strides = [1, 1]} : vector<8x512xf32> to vector<8x32xf32>
    %115 = vector.extract_strided_slice %75 {offsets = [0, 0], sizes = [8, 480], strides = [1, 1]} : vector<8x512xf32> to vector<8x480xf32>
    %116 = tpu.concatenate %114, %115 in 1 : vector<8x32xf32>, vector<8x480xf32> -> vector<8x512xf32>
    %c1_47 = arith.constant 1 : index
    %c0_48 = arith.constant 0 : index
    %c0_49 = arith.constant 0 : index
    %117 = vector.load %arg3[%c1_47, %c0_48, %c0_49] : memref<9x1x512xf32, #tpu.memory_space<vmem>>, vector<1x1x512xf32>
    %118 = vector.shape_cast %117 : vector<1x1x512xf32> to vector<1x512xf32>
    %119 = vector.broadcast %118 : vector<1x512xf32> to vector<8x512xf32>
    %120 = arith.mulf %116, %119 : vector<8x512xf32>
    %c1_50 = arith.constant 1 : index
    %c0_51 = arith.constant 0 : index
    %c0_52 = arith.constant 0 : index
    %121 = vector.load %arg8[%c1_50, %c0_51, %c0_52] : memref<9x8x1xf32, #tpu.memory_space<vmem>>, vector<1x8x1xf32>
    %122 = vector.shape_cast %121 : vector<1x8x1xf32> to vector<8x1xf32>
    %123 = vector.broadcast %122 : vector<8x1xf32> to vector<8x512xf32>
    %124 = arith.mulf %123, %120 : vector<8x512xf32>
    %125 = arith.addf %101, %124 : vector<8x512xf32>
    %126 = vector.extract_strided_slice %75 {offsets = [0, 497], sizes = [8, 15], strides = [1, 1]} : vector<8x512xf32> to vector<8x15xf32>
    %127 = vector.extract_strided_slice %75 {offsets = [0, 0], sizes = [8, 497], strides = [1, 1]} : vector<8x512xf32> to vector<8x497xf32>
    %128 = tpu.concatenate %126, %127 in 1 : vector<8x15xf32>, vector<8x497xf32> -> vector<8x512xf32>
    %c2_53 = arith.constant 2 : index
    %c0_54 = arith.constant 0 : index
    %c0_55 = arith.constant 0 : index
    %129 = vector.load %arg2[%c2_53, %c0_54, %c0_55] : memref<9x1x512xf32, #tpu.memory_space<vmem>>, vector<1x1x512xf32>
    %130 = vector.shape_cast %129 : vector<1x1x512xf32> to vector<1x512xf32>
    %131 = vector.broadcast %130 : vector<1x512xf32> to vector<8x512xf32>
    %132 = arith.mulf %128, %131 : vector<8x512xf32>
    %c2_56 = arith.constant 2 : index
    %c0_57 = arith.constant 0 : index
    %c0_58 = arith.constant 0 : index
    %133 = vector.load %arg6[%c2_56, %c0_57, %c0_58] : memref<9x8x1xf32, #tpu.memory_space<vmem>>, vector<1x8x1xf32>
    %134 = vector.shape_cast %133 : vector<1x8x1xf32> to vector<8x1xf32>
    %135 = vector.broadcast %134 : vector<8x1xf32> to vector<8x512xf32>
    %136 = arith.mulf %135, %132 : vector<8x512xf32>
    %137 = arith.addf %113, %136 : vector<8x512xf32>
    %138 = vector.extract_strided_slice %75 {offsets = [0, 482], sizes = [8, 30], strides = [1, 1]} : vector<8x512xf32> to vector<8x30xf32>
    %139 = vector.extract_strided_slice %75 {offsets = [0, 0], sizes = [8, 482], strides = [1, 1]} : vector<8x512xf32> to vector<8x482xf32>
    %140 = tpu.concatenate %138, %139 in 1 : vector<8x30xf32>, vector<8x482xf32> -> vector<8x512xf32>
    %c2_59 = arith.constant 2 : index
    %c0_60 = arith.constant 0 : index
    %c0_61 = arith.constant 0 : index
    %141 = vector.load %arg3[%c2_59, %c0_60, %c0_61] : memref<9x1x512xf32, #tpu.memory_space<vmem>>, vector<1x1x512xf32>
    %142 = vector.shape_cast %141 : vector<1x1x512xf32> to vector<1x512xf32>
    %143 = vector.broadcast %142 : vector<1x512xf32> to vector<8x512xf32>
    %144 = arith.mulf %140, %143 : vector<8x512xf32>
    %c2_62 = arith.constant 2 : index
    %c0_63 = arith.constant 0 : index
    %c0_64 = arith.constant 0 : index
    %145 = vector.load %arg8[%c2_62, %c0_63, %c0_64] : memref<9x8x1xf32, #tpu.memory_space<vmem>>, vector<1x8x1xf32>
    %146 = vector.shape_cast %145 : vector<1x8x1xf32> to vector<8x1xf32>
    %147 = vector.broadcast %146 : vector<8x1xf32> to vector<8x512xf32>
    %148 = arith.mulf %147, %144 : vector<8x512xf32>
    %149 = arith.addf %125, %148 : vector<8x512xf32>
    %150 = vector.extract_strided_slice %75 {offsets = [0, 511], sizes = [8, 1], strides = [1, 1]} : vector<8x512xf32> to vector<8x1xf32>
    %151 = vector.extract_strided_slice %75 {offsets = [0, 0], sizes = [8, 511], strides = [1, 1]} : vector<8x512xf32> to vector<8x511xf32>
    %152 = tpu.concatenate %150, %151 in 1 : vector<8x1xf32>, vector<8x511xf32> -> vector<8x512xf32>
    %c3_65 = arith.constant 3 : index
    %c0_66 = arith.constant 0 : index
    %c0_67 = arith.constant 0 : index
    %153 = vector.load %arg2[%c3_65, %c0_66, %c0_67] : memref<9x1x512xf32, #tpu.memory_space<vmem>>, vector<1x1x512xf32>
    %154 = vector.shape_cast %153 : vector<1x1x512xf32> to vector<1x512xf32>
    %155 = vector.broadcast %154 : vector<1x512xf32> to vector<8x512xf32>
    %156 = arith.mulf %152, %155 : vector<8x512xf32>
    %c3_68 = arith.constant 3 : index
    %c0_69 = arith.constant 0 : index
    %c0_70 = arith.constant 0 : index
    %157 = vector.load %arg6[%c3_68, %c0_69, %c0_70] : memref<9x8x1xf32, #tpu.memory_space<vmem>>, vector<1x8x1xf32>
    %158 = vector.shape_cast %157 : vector<1x8x1xf32> to vector<8x1xf32>
    %159 = vector.broadcast %158 : vector<8x1xf32> to vector<8x512xf32>
    %160 = arith.mulf %159, %156 : vector<8x512xf32>
    %161 = arith.addf %137, %160 : vector<8x512xf32>
    %162 = vector.extract_strided_slice %75 {offsets = [0, 510], sizes = [8, 2], strides = [1, 1]} : vector<8x512xf32> to vector<8x2xf32>
    %163 = vector.extract_strided_slice %75 {offsets = [0, 0], sizes = [8, 510], strides = [1, 1]} : vector<8x512xf32> to vector<8x510xf32>
    %164 = tpu.concatenate %162, %163 in 1 : vector<8x2xf32>, vector<8x510xf32> -> vector<8x512xf32>
    %c3_71 = arith.constant 3 : index
    %c0_72 = arith.constant 0 : index
    %c0_73 = arith.constant 0 : index
    %165 = vector.load %arg3[%c3_71, %c0_72, %c0_73] : memref<9x1x512xf32, #tpu.memory_space<vmem>>, vector<1x1x512xf32>
    %166 = vector.shape_cast %165 : vector<1x1x512xf32> to vector<1x512xf32>
    %167 = vector.broadcast %166 : vector<1x512xf32> to vector<8x512xf32>
    %168 = arith.mulf %164, %167 : vector<8x512xf32>
    %c3_74 = arith.constant 3 : index
    %c0_75 = arith.constant 0 : index
    %c0_76 = arith.constant 0 : index
    %169 = vector.load %arg8[%c3_74, %c0_75, %c0_76] : memref<9x8x1xf32, #tpu.memory_space<vmem>>, vector<1x8x1xf32>
    %170 = vector.shape_cast %169 : vector<1x8x1xf32> to vector<8x1xf32>
    %171 = vector.broadcast %170 : vector<8x1xf32> to vector<8x512xf32>
    %172 = arith.mulf %171, %168 : vector<8x512xf32>
    %173 = arith.addf %149, %172 : vector<8x512xf32>
    %c4 = arith.constant 4 : index
    %c0_77 = arith.constant 0 : index
    %c0_78 = arith.constant 0 : index
    %174 = vector.load %arg6[%c4, %c0_77, %c0_78] : memref<9x8x1xf32, #tpu.memory_space<vmem>>, vector<1x8x1xf32>
    %175 = vector.shape_cast %174 : vector<1x8x1xf32> to vector<8x1xf32>
    %176 = vector.broadcast %175 : vector<8x1xf32> to vector<8x512xf32>
    %177 = arith.mulf %176, %75 : vector<8x512xf32>
    %178 = arith.addf %161, %177 : vector<8x512xf32>
    %c4_79 = arith.constant 4 : index
    %c0_80 = arith.constant 0 : index
    %c0_81 = arith.constant 0 : index
    %179 = vector.load %arg8[%c4_79, %c0_80, %c0_81] : memref<9x8x1xf32, #tpu.memory_space<vmem>>, vector<1x8x1xf32>
    %180 = vector.shape_cast %179 : vector<1x8x1xf32> to vector<8x1xf32>
    %181 = vector.broadcast %180 : vector<8x1xf32> to vector<8x512xf32>
    %182 = arith.mulf %181, %75 : vector<8x512xf32>
    %183 = arith.addf %173, %182 : vector<8x512xf32>
    %184 = vector.extract_strided_slice %75 {offsets = [0, 1], sizes = [8, 511], strides = [1, 1]} : vector<8x512xf32> to vector<8x511xf32>
    %185 = vector.extract_strided_slice %75 {offsets = [0, 0], sizes = [8, 1], strides = [1, 1]} : vector<8x512xf32> to vector<8x1xf32>
    %186 = tpu.concatenate %184, %185 in 1 : vector<8x511xf32>, vector<8x1xf32> -> vector<8x512xf32>
    %c5_82 = arith.constant 5 : index
    %c0_83 = arith.constant 0 : index
    %c0_84 = arith.constant 0 : index
    %187 = vector.load %arg2[%c5_82, %c0_83, %c0_84] : memref<9x1x512xf32, #tpu.memory_space<vmem>>, vector<1x1x512xf32>
    %188 = vector.shape_cast %187 : vector<1x1x512xf32> to vector<1x512xf32>
    %189 = vector.broadcast %188 : vector<1x512xf32> to vector<8x512xf32>
    %190 = arith.mulf %186, %189 : vector<8x512xf32>
    %c5_85 = arith.constant 5 : index
    %c0_86 = arith.constant 0 : index
    %c0_87 = arith.constant 0 : index
    %191 = vector.load %arg6[%c5_85, %c0_86, %c0_87] : memref<9x8x1xf32, #tpu.memory_space<vmem>>, vector<1x8x1xf32>
    %192 = vector.shape_cast %191 : vector<1x8x1xf32> to vector<8x1xf32>
    %193 = vector.broadcast %192 : vector<8x1xf32> to vector<8x512xf32>
    %194 = arith.mulf %193, %190 : vector<8x512xf32>
    %195 = arith.addf %178, %194 : vector<8x512xf32>
    %196 = vector.extract_strided_slice %75 {offsets = [0, 2], sizes = [8, 510], strides = [1, 1]} : vector<8x512xf32> to vector<8x510xf32>
    %197 = vector.extract_strided_slice %75 {offsets = [0, 0], sizes = [8, 2], strides = [1, 1]} : vector<8x512xf32> to vector<8x2xf32>
    %198 = tpu.concatenate %196, %197 in 1 : vector<8x510xf32>, vector<8x2xf32> -> vector<8x512xf32>
    %c5_88 = arith.constant 5 : index
    %c0_89 = arith.constant 0 : index
    %c0_90 = arith.constant 0 : index
    %199 = vector.load %arg3[%c5_88, %c0_89, %c0_90] : memref<9x1x512xf32, #tpu.memory_space<vmem>>, vector<1x1x512xf32>
    %200 = vector.shape_cast %199 : vector<1x1x512xf32> to vector<1x512xf32>
    %201 = vector.broadcast %200 : vector<1x512xf32> to vector<8x512xf32>
    %202 = arith.mulf %198, %201 : vector<8x512xf32>
    %c5_91 = arith.constant 5 : index
    %c0_92 = arith.constant 0 : index
    %c0_93 = arith.constant 0 : index
    %203 = vector.load %arg8[%c5_91, %c0_92, %c0_93] : memref<9x8x1xf32, #tpu.memory_space<vmem>>, vector<1x8x1xf32>
    %204 = vector.shape_cast %203 : vector<1x8x1xf32> to vector<8x1xf32>
    %205 = vector.broadcast %204 : vector<8x1xf32> to vector<8x512xf32>
    %206 = arith.mulf %205, %202 : vector<8x512xf32>
    %207 = arith.addf %183, %206 : vector<8x512xf32>
    %208 = vector.extract_strided_slice %75 {offsets = [0, 15], sizes = [8, 497], strides = [1, 1]} : vector<8x512xf32> to vector<8x497xf32>
    %209 = vector.extract_strided_slice %75 {offsets = [0, 0], sizes = [8, 15], strides = [1, 1]} : vector<8x512xf32> to vector<8x15xf32>
    %210 = tpu.concatenate %208, %209 in 1 : vector<8x497xf32>, vector<8x15xf32> -> vector<8x512xf32>
    %c6_94 = arith.constant 6 : index
    %c0_95 = arith.constant 0 : index
    %c0_96 = arith.constant 0 : index
    %211 = vector.load %arg2[%c6_94, %c0_95, %c0_96] : memref<9x1x512xf32, #tpu.memory_space<vmem>>, vector<1x1x512xf32>
    %212 = vector.shape_cast %211 : vector<1x1x512xf32> to vector<1x512xf32>
    %213 = vector.broadcast %212 : vector<1x512xf32> to vector<8x512xf32>
    %214 = arith.mulf %210, %213 : vector<8x512xf32>
    %c6_97 = arith.constant 6 : index
    %c0_98 = arith.constant 0 : index
    %c0_99 = arith.constant 0 : index
    %215 = vector.load %arg6[%c6_97, %c0_98, %c0_99] : memref<9x8x1xf32, #tpu.memory_space<vmem>>, vector<1x8x1xf32>
    %216 = vector.shape_cast %215 : vector<1x8x1xf32> to vector<8x1xf32>
    %217 = vector.broadcast %216 : vector<8x1xf32> to vector<8x512xf32>
    %218 = arith.mulf %217, %214 : vector<8x512xf32>
    %219 = arith.addf %195, %218 : vector<8x512xf32>
    %220 = vector.extract_strided_slice %75 {offsets = [0, 30], sizes = [8, 482], strides = [1, 1]} : vector<8x512xf32> to vector<8x482xf32>
    %221 = vector.extract_strided_slice %75 {offsets = [0, 0], sizes = [8, 30], strides = [1, 1]} : vector<8x512xf32> to vector<8x30xf32>
    %222 = tpu.concatenate %220, %221 in 1 : vector<8x482xf32>, vector<8x30xf32> -> vector<8x512xf32>
    %c6_100 = arith.constant 6 : index
    %c0_101 = arith.constant 0 : index
    %c0_102 = arith.constant 0 : index
    %223 = vector.load %arg3[%c6_100, %c0_101, %c0_102] : memref<9x1x512xf32, #tpu.memory_space<vmem>>, vector<1x1x512xf32>
    %224 = vector.shape_cast %223 : vector<1x1x512xf32> to vector<1x512xf32>
    %225 = vector.broadcast %224 : vector<1x512xf32> to vector<8x512xf32>
    %226 = arith.mulf %222, %225 : vector<8x512xf32>
    %c6_103 = arith.constant 6 : index
    %c0_104 = arith.constant 0 : index
    %c0_105 = arith.constant 0 : index
    %227 = vector.load %arg8[%c6_103, %c0_104, %c0_105] : memref<9x8x1xf32, #tpu.memory_space<vmem>>, vector<1x8x1xf32>
    %228 = vector.shape_cast %227 : vector<1x8x1xf32> to vector<8x1xf32>
    %229 = vector.broadcast %228 : vector<8x1xf32> to vector<8x512xf32>
    %230 = arith.mulf %229, %226 : vector<8x512xf32>
    %231 = arith.addf %207, %230 : vector<8x512xf32>
    %232 = vector.extract_strided_slice %75 {offsets = [0, 16], sizes = [8, 496], strides = [1, 1]} : vector<8x512xf32> to vector<8x496xf32>
    %233 = vector.extract_strided_slice %75 {offsets = [0, 0], sizes = [8, 16], strides = [1, 1]} : vector<8x512xf32> to vector<8x16xf32>
    %234 = tpu.concatenate %232, %233 in 1 : vector<8x496xf32>, vector<8x16xf32> -> vector<8x512xf32>
    %c7_106 = arith.constant 7 : index
    %c0_107 = arith.constant 0 : index
    %c0_108 = arith.constant 0 : index
    %235 = vector.load %arg2[%c7_106, %c0_107, %c0_108] : memref<9x1x512xf32, #tpu.memory_space<vmem>>, vector<1x1x512xf32>
    %236 = vector.shape_cast %235 : vector<1x1x512xf32> to vector<1x512xf32>
    %237 = vector.broadcast %236 : vector<1x512xf32> to vector<8x512xf32>
    %238 = arith.mulf %234, %237 : vector<8x512xf32>
    %c7_109 = arith.constant 7 : index
    %c0_110 = arith.constant 0 : index
    %c0_111 = arith.constant 0 : index
    %239 = vector.load %arg6[%c7_109, %c0_110, %c0_111] : memref<9x8x1xf32, #tpu.memory_space<vmem>>, vector<1x8x1xf32>
    %240 = vector.shape_cast %239 : vector<1x8x1xf32> to vector<8x1xf32>
    %241 = vector.broadcast %240 : vector<8x1xf32> to vector<8x512xf32>
    %242 = arith.mulf %241, %238 : vector<8x512xf32>
    %243 = arith.addf %219, %242 : vector<8x512xf32>
    %244 = vector.extract_strided_slice %75 {offsets = [0, 32], sizes = [8, 480], strides = [1, 1]} : vector<8x512xf32> to vector<8x480xf32>
    %245 = vector.extract_strided_slice %75 {offsets = [0, 0], sizes = [8, 32], strides = [1, 1]} : vector<8x512xf32> to vector<8x32xf32>
    %246 = tpu.concatenate %244, %245 in 1 : vector<8x480xf32>, vector<8x32xf32> -> vector<8x512xf32>
    %c7_112 = arith.constant 7 : index
    %c0_113 = arith.constant 0 : index
    %c0_114 = arith.constant 0 : index
    %247 = vector.load %arg3[%c7_112, %c0_113, %c0_114] : memref<9x1x512xf32, #tpu.memory_space<vmem>>, vector<1x1x512xf32>
    %248 = vector.shape_cast %247 : vector<1x1x512xf32> to vector<1x512xf32>
    %249 = vector.broadcast %248 : vector<1x512xf32> to vector<8x512xf32>
    %250 = arith.mulf %246, %249 : vector<8x512xf32>
    %c7_115 = arith.constant 7 : index
    %c0_116 = arith.constant 0 : index
    %c0_117 = arith.constant 0 : index
    %251 = vector.load %arg8[%c7_115, %c0_116, %c0_117] : memref<9x8x1xf32, #tpu.memory_space<vmem>>, vector<1x8x1xf32>
    %252 = vector.shape_cast %251 : vector<1x8x1xf32> to vector<8x1xf32>
    %253 = vector.broadcast %252 : vector<8x1xf32> to vector<8x512xf32>
    %254 = arith.mulf %253, %250 : vector<8x512xf32>
    %255 = arith.addf %231, %254 : vector<8x512xf32>
    %256 = vector.extract_strided_slice %75 {offsets = [0, 17], sizes = [8, 495], strides = [1, 1]} : vector<8x512xf32> to vector<8x495xf32>
    %257 = vector.extract_strided_slice %75 {offsets = [0, 0], sizes = [8, 17], strides = [1, 1]} : vector<8x512xf32> to vector<8x17xf32>
    %258 = tpu.concatenate %256, %257 in 1 : vector<8x495xf32>, vector<8x17xf32> -> vector<8x512xf32>
    %c8_118 = arith.constant 8 : index
    %c0_119 = arith.constant 0 : index
    %c0_120 = arith.constant 0 : index
    %259 = vector.load %arg2[%c8_118, %c0_119, %c0_120] : memref<9x1x512xf32, #tpu.memory_space<vmem>>, vector<1x1x512xf32>
    %260 = vector.shape_cast %259 : vector<1x1x512xf32> to vector<1x512xf32>
    %261 = vector.broadcast %260 : vector<1x512xf32> to vector<8x512xf32>
    %262 = arith.mulf %258, %261 : vector<8x512xf32>
    %c8_121 = arith.constant 8 : index
    %c0_122 = arith.constant 0 : index
    %c0_123 = arith.constant 0 : index
    %263 = vector.load %arg6[%c8_121, %c0_122, %c0_123] : memref<9x8x1xf32, #tpu.memory_space<vmem>>, vector<1x8x1xf32>
    %264 = vector.shape_cast %263 : vector<1x8x1xf32> to vector<8x1xf32>
    %265 = vector.broadcast %264 : vector<8x1xf32> to vector<8x512xf32>
    %266 = arith.mulf %265, %262 : vector<8x512xf32>
    %267 = arith.addf %243, %266 : vector<8x512xf32>
    %268 = vector.extract_strided_slice %75 {offsets = [0, 34], sizes = [8, 478], strides = [1, 1]} : vector<8x512xf32> to vector<8x478xf32>
    %269 = vector.extract_strided_slice %75 {offsets = [0, 0], sizes = [8, 34], strides = [1, 1]} : vector<8x512xf32> to vector<8x34xf32>
    %270 = tpu.concatenate %268, %269 in 1 : vector<8x478xf32>, vector<8x34xf32> -> vector<8x512xf32>
    %c8_124 = arith.constant 8 : index
    %c0_125 = arith.constant 0 : index
    %c0_126 = arith.constant 0 : index
    %271 = vector.load %arg3[%c8_124, %c0_125, %c0_126] : memref<9x1x512xf32, #tpu.memory_space<vmem>>, vector<1x1x512xf32>
    %272 = vector.shape_cast %271 : vector<1x1x512xf32> to vector<1x512xf32>
    %273 = vector.broadcast %272 : vector<1x512xf32> to vector<8x512xf32>
    %274 = arith.mulf %270, %273 : vector<8x512xf32>
    %c8_127 = arith.constant 8 : index
    %c0_128 = arith.constant 0 : index
    %c0_129 = arith.constant 0 : index
    %275 = vector.load %arg8[%c8_127, %c0_128, %c0_129] : memref<9x8x1xf32, #tpu.memory_space<vmem>>, vector<1x8x1xf32>
    %276 = vector.shape_cast %275 : vector<1x8x1xf32> to vector<8x1xf32>
    %277 = vector.broadcast %276 : vector<8x1xf32> to vector<8x512xf32>
    %278 = arith.mulf %277, %274 : vector<8x512xf32>
    %279 = arith.addf %255, %278 : vector<8x512xf32>
    %c0_130 = arith.constant 0 : index
    %c0_131 = arith.constant 0 : index
    %280 = vector.load %arg7[%c0_130, %c0_131] : memref<8x1xf32, #tpu.memory_space<vmem>>, vector<8x1xf32>
    %281 = vector.broadcast %280 : vector<8x1xf32> to vector<8x512xf32>
    %282 = arith.addf %267, %281 : vector<8x512xf32>
    %cst_132 = arith.constant 0.000000e+00 : f32
    %283 = vector.broadcast %cst_132 : f32 to vector<8x512xf32>
    %284 = arith.cmpf ogt, %282, %283 : vector<8x512xf32>
    %cst_133 = arith.constant 0.000000e+00 : f32
    %285 = vector.broadcast %cst_133 : f32 to vector<8x512xf32>
    %286 = arith.minimumf %282, %285 : vector<8x512xf32>
    %287 = math.exp %286 : vector<8x512xf32>
    %cst_134 = arith.constant 1.000000e+00 : f32
    %288 = vector.broadcast %cst_134 : f32 to vector<8x512xf32>
    %289 = arith.subf %287, %288 : vector<8x512xf32>
    %cst_135 = arith.constant 1.67326319 : f32
    %290 = vector.broadcast %cst_135 : f32 to vector<8x512xf32>
    %291 = arith.mulf %290, %289 : vector<8x512xf32>
    %292 = arith.select %284, %282, %291 : vector<8x512xi1>, vector<8x512xf32>
    %cst_136 = arith.constant 1.05070102 : f32
    %293 = vector.broadcast %cst_136 : f32 to vector<8x512xf32>
    %294 = arith.mulf %293, %292 : vector<8x512xf32>
    %c0_137 = arith.constant 0 : index
    %c0_138 = arith.constant 0 : index
    %295 = vector.load %arg9[%c0_137, %c0_138] : memref<8x1xf32, #tpu.memory_space<vmem>>, vector<8x1xf32>
    %296 = vector.broadcast %295 : vector<8x1xf32> to vector<8x512xf32>
    %297 = arith.addf %279, %296 : vector<8x512xf32>
    %cst_139 = arith.constant 0.000000e+00 : f32
    %298 = vector.broadcast %cst_139 : f32 to vector<8x512xf32>
    %299 = arith.cmpf ogt, %297, %298 : vector<8x512xf32>
    %cst_140 = arith.constant 0.000000e+00 : f32
    %300 = vector.broadcast %cst_140 : f32 to vector<8x512xf32>
    %301 = arith.minimumf %297, %300 : vector<8x512xf32>
    %302 = math.exp %301 : vector<8x512xf32>
    %cst_141 = arith.constant 1.000000e+00 : f32
    %303 = vector.broadcast %cst_141 : f32 to vector<8x512xf32>
    %304 = arith.subf %302, %303 : vector<8x512xf32>
    %cst_142 = arith.constant 1.67326319 : f32
    %305 = vector.broadcast %cst_142 : f32 to vector<8x512xf32>
    %306 = arith.mulf %305, %304 : vector<8x512xf32>
    %307 = arith.select %299, %297, %306 : vector<8x512xi1>, vector<8x512xf32>
    %cst_143 = arith.constant 1.05070102 : f32
    %308 = vector.broadcast %cst_143 : f32 to vector<8x512xf32>
    %309 = arith.mulf %308, %307 : vector<8x512xf32>
    %c0_144 = arith.constant 0 : index
    %c0_145 = arith.constant 0 : index
    %310 = vector.load %arg10[%c0_144, %c0_145] : memref<8x1xf32, #tpu.memory_space<vmem>>, vector<8x1xf32>
    %311 = arith.addf %75, %294 : vector<8x512xf32>
    %312 = arith.addf %311, %309 : vector<8x512xf32>
    %313 = vector.broadcast %310 : vector<8x1xf32> to vector<8x512xf32>
    %314 = arith.mulf %313, %312 : vector<8x512xf32>
    %c0_146 = arith.constant 0 : index
    %c0_147 = arith.constant 0 : index
    %315 = vector.load %arg11[%c0_146, %c0_147] : memref<8x1xf32, #tpu.memory_space<vmem>>, vector<8x1xf32>
    %316 = vector.broadcast %315 : vector<8x1xf32> to vector<8x512xf32>
    %317 = arith.addf %314, %316 : vector<8x512xf32>
    %cst_148 = arith.constant 0.000000e+00 : f32
    %318 = vector.broadcast %cst_148 : f32 to vector<8x512xf32>
    %319 = arith.cmpf ogt, %317, %318 : vector<8x512xf32>
    %cst_149 = arith.constant 0.000000e+00 : f32
    %320 = vector.broadcast %cst_149 : f32 to vector<8x512xf32>
    %321 = arith.minimumf %317, %320 : vector<8x512xf32>
    %322 = math.exp %321 : vector<8x512xf32>
    %cst_150 = arith.constant 1.000000e+00 : f32
    %323 = vector.broadcast %cst_150 : f32 to vector<8x512xf32>
    %324 = arith.subf %322, %323 : vector<8x512xf32>
    %cst_151 = arith.constant 1.67326319 : f32
    %325 = vector.broadcast %cst_151 : f32 to vector<8x512xf32>
    %326 = arith.mulf %325, %324 : vector<8x512xf32>
    %327 = arith.select %319, %317, %326 : vector<8x512xi1>, vector<8x512xf32>
    %cst_152 = arith.constant 1.05070102 : f32
    %328 = vector.broadcast %cst_152 : f32 to vector<8x512xf32>
    %329 = arith.mulf %328, %327 : vector<8x512xf32>
    %330 = tpu.concatenate %0, %329 in 0 : vector<16x512xf32>, vector<8x512xf32> -> vector<24x512xf32>
    %c0_153 = arith.constant 0 : index
    %c0_154 = arith.constant 0 : index
    %331 = vector.load %arg12[%c0_153, %c0_154] : memref<32x24xf32, #tpu.memory_space<vmem>>, vector<32x24xf32>
    %cst_155 = arith.constant dense<0.000000e+00> : vector<32x512xf32>
    %332 = tpu.matmul %331, %330, %cst_155 {dimension_numbers = #tpu.dot_dimension_numbers<[1], [0], [0], [1], [0, 0, 1, 1], [], []>} : vector<32x24xf32>, vector<24x512xf32>, vector<32x512xf32> -> vector<32x512xf32>
    %333 = vector.extract_strided_slice %332 {offsets = [0, 0], sizes = [16, 512], strides = [1, 1]} : vector<32x512xf32> to vector<16x512xf32>
    %c0_156 = arith.constant 0 : index
    %c0_157 = arith.constant 0 : index
    %334 = vector.load %arg13[%c0_156, %c0_157] : memref<16x1xf32, #tpu.memory_space<vmem>>, vector<16x1xf32>
    %335 = vector.broadcast %334 : vector<16x1xf32> to vector<16x512xf32>
    %336 = arith.addf %333, %335 : vector<16x512xf32>
    %cst_158 = arith.constant 0.000000e+00 : f32
    %337 = vector.broadcast %cst_158 : f32 to vector<16x512xf32>
    %338 = arith.cmpf ogt, %336, %337 : vector<16x512xf32>
    %cst_159 = arith.constant 0.000000e+00 : f32
    %339 = vector.broadcast %cst_159 : f32 to vector<16x512xf32>
    %340 = arith.minimumf %336, %339 : vector<16x512xf32>
    %341 = math.exp %340 : vector<16x512xf32>
    %cst_160 = arith.constant 1.000000e+00 : f32
    %342 = vector.broadcast %cst_160 : f32 to vector<16x512xf32>
    %343 = arith.subf %341, %342 : vector<16x512xf32>
    %cst_161 = arith.constant 1.67326319 : f32
    %344 = vector.broadcast %cst_161 : f32 to vector<16x512xf32>
    %345 = arith.mulf %344, %343 : vector<16x512xf32>
    %346 = arith.select %338, %336, %345 : vector<16x512xi1>, vector<16x512xf32>
    %cst_162 = arith.constant 1.05070102 : f32
    %347 = vector.broadcast %cst_162 : f32 to vector<16x512xf32>
    %348 = arith.mulf %347, %346 : vector<16x512xf32>
    %349 = vector.extract_strided_slice %332 {offsets = [16, 0], sizes = [16, 512], strides = [1, 1]} : vector<32x512xf32> to vector<16x512xf32>
    %c0_163 = arith.constant 0 : index
    %c0_164 = arith.constant 0 : index
    %350 = vector.load %arg14[%c0_163, %c0_164] : memref<16x1xf32, #tpu.memory_space<vmem>>, vector<16x1xf32>
    %351 = vector.broadcast %350 : vector<16x1xf32> to vector<16x512xf32>
    %352 = arith.addf %349, %351 : vector<16x512xf32>
    %353 = arith.addf %348, %352 : vector<16x512xf32>
    %cst_165 = arith.constant 0.000000e+00 : f32
    %354 = vector.broadcast %cst_165 : f32 to vector<16x512xf32>
    %355 = arith.maximumf %353, %354 : vector<16x512xf32>
    %c0_166 = arith.constant 0 : index
    %c0_167 = arith.constant 0 : index
    %356 = vector.load %arg15[%c0_166, %c0_167] : memref<16x4xf32, #tpu.memory_space<vmem>>, vector<16x4xf32>
    %c0_168 = arith.constant 0 : index
    %c0_169 = arith.constant 0 : index
    %357 = vector.load %arg16[%c0_168, %c0_169] : memref<16x4xf32, #tpu.memory_space<vmem>>, vector<16x4xf32>
    %358 = vector.extract_strided_slice %355 {offsets = [0, 0], sizes = [16, 256], strides = [1, 1]} : vector<16x512xf32> to vector<16x256xf32>
    %cst_170 = arith.constant dense<0.000000e+00> : vector<16xf32>
    %359 = vector.multi_reduction <add>, %358, %cst_170 [1] : vector<16x256xf32> to vector<16xf32>
    %360 = vector.shape_cast %359 : vector<16xf32> to vector<16x1xf32>
    %cst_171 = arith.constant 3.906250e-03 : f32
    %361 = vector.broadcast %cst_171 : f32 to vector<16x1xf32>
    %362 = arith.mulf %360, %361 : vector<16x1xf32>
    %363 = vector.broadcast %362 : vector<16x1xf32> to vector<16x4xf32>
    %364 = arith.mulf %356, %363 : vector<16x4xf32>
    %cst_172 = arith.constant dense<0.000000e+00> : vector<4xf32>
    %365 = vector.multi_reduction <add>, %364, %cst_172 [0] : vector<16x4xf32> to vector<4xf32>
    %366 = vector.shape_cast %365 : vector<4xf32> to vector<1x4xf32>
    %cst_173 = arith.constant 0.000000e+00 : f32
    %367 = vector.broadcast %cst_173 : f32 to vector<1x4xf32>
    %368 = arith.maximumf %366, %367 : vector<1x4xf32>
    %369 = vector.broadcast %368 : vector<1x4xf32> to vector<16x4xf32>
    %370 = arith.mulf %357, %369 : vector<16x4xf32>
    %cst_174 = arith.constant dense<0.000000e+00> : vector<16xf32>
    %371 = vector.multi_reduction <add>, %370, %cst_174 [1] : vector<16x4xf32> to vector<16xf32>
    %372 = vector.shape_cast %371 : vector<16xf32> to vector<16x1xf32>
    %cst_175 = arith.constant 0.000000e+00 : f32
    %373 = vector.broadcast %cst_175 : f32 to vector<16x1xf32>
    %374 = arith.subf %373, %372 : vector<16x1xf32>
    %375 = math.exp %374 : vector<16x1xf32>
    %cst_176 = arith.constant 1.000000e+00 : f32
    %376 = vector.broadcast %cst_176 : f32 to vector<16x1xf32>
    %377 = arith.addf %376, %375 : vector<16x1xf32>
    %cst_177 = arith.constant 1.000000e+00 : f32
    %378 = vector.broadcast %cst_177 : f32 to vector<16x1xf32>
    %379 = arith.divf %378, %377 : vector<16x1xf32>
    %380 = vector.broadcast %379 : vector<16x1xf32> to vector<16x256xf32>
    %381 = arith.mulf %358, %380 : vector<16x256xf32>
    %c0_178 = arith.constant 0 : index
    %c0_179 = arith.constant 0 : index
    %382 = vector.load %arg17[%c0_178, %c0_179] : memref<16x512xf32, #tpu.memory_space<vmem>>, vector<16x256xf32>
    tpu.vector_store %arg17[%c0_178, %c0_179], %381 {strides = array<i32>} : memref<16x512xf32, #tpu.memory_space<vmem>>, vector<16x256xf32>,
    %383 = vector.extract_strided_slice %355 {offsets = [0, 256], sizes = [16, 256], strides = [1, 1]} : vector<16x512xf32> to vector<16x256xf32>
    %cst_180 = arith.constant dense<0.000000e+00> : vector<16xf32>
    %384 = vector.multi_reduction <add>, %383, %cst_180 [1] : vector<16x256xf32> to vector<16xf32>
    %385 = vector.shape_cast %384 : vector<16xf32> to vector<16x1xf32>
    %cst_181 = arith.constant 3.906250e-03 : f32
    %386 = vector.broadcast %cst_181 : f32 to vector<16x1xf32>
    %387 = arith.mulf %385, %386 : vector<16x1xf32>
    %388 = vector.broadcast %387 : vector<16x1xf32> to vector<16x4xf32>
    %389 = arith.mulf %356, %388 : vector<16x4xf32>
    %cst_182 = arith.constant dense<0.000000e+00> : vector<4xf32>
    %390 = vector.multi_reduction <add>, %389, %cst_182 [0] : vector<16x4xf32> to vector<4xf32>
    %391 = vector.shape_cast %390 : vector<4xf32> to vector<1x4xf32>
    %cst_183 = arith.constant 0.000000e+00 : f32
    %392 = vector.broadcast %cst_183 : f32 to vector<1x4xf32>
    %393 = arith.maximumf %391, %392 : vector<1x4xf32>
    %394 = vector.broadcast %393 : vector<1x4xf32> to vector<16x4xf32>
    %395 = arith.mulf %357, %394 : vector<16x4xf32>
    %cst_184 = arith.constant dense<0.000000e+00> : vector<16xf32>
    %396 = vector.multi_reduction <add>, %395, %cst_184 [1] : vector<16x4xf32> to vector<16xf32>
    %397 = vector.shape_cast %396 : vector<16xf32> to vector<16x1xf32>
    %cst_185 = arith.constant 0.000000e+00 : f32
    %398 = vector.broadcast %cst_185 : f32 to vector<16x1xf32>
    %399 = arith.subf %398, %397 : vector<16x1xf32>
    %400 = math.exp %399 : vector<16x1xf32>
    %cst_186 = arith.constant 1.000000e+00 : f32
    %401 = vector.broadcast %cst_186 : f32 to vector<16x1xf32>
    %402 = arith.addf %401, %400 : vector<16x1xf32>
    %cst_187 = arith.constant 1.000000e+00 : f32
    %403 = vector.broadcast %cst_187 : f32 to vector<16x1xf32>
    %404 = arith.divf %403, %402 : vector<16x1xf32>
    %405 = vector.broadcast %404 : vector<16x1xf32> to vector<16x256xf32>
    %406 = arith.mulf %383, %405 : vector<16x256xf32>
    %c0_188 = arith.constant 0 : index
    %c256 = arith.constant 256 : index
    %407 = vector.load %arg17[%c0_188, %c256] : memref<16x512xf32, #tpu.memory_space<vmem>>, vector<16x256xf32>
    tpu.vector_store %arg17[%c0_188, %c256], %406 {strides = array<i32>} : memref<16x512xf32, #tpu.memory_space<vmem>>, vector<16x256xf32>,
    return
  }
  func.func @transform_0(%arg0: i32) -> (i32, i32) {
    %c0_i32 = arith.constant 0 : i32
    %c0_i32_0 = arith.constant 0 : i32
    return %c0_i32, %arg0 : i32, i32
  }
  func.func @transform_1(%arg0: i32) -> (i32, i32, i32) {
    %c0_i32 = arith.constant 0 : i32
    %c0_i32_0 = arith.constant 0 : i32
    %c0_i32_1 = arith.constant 0 : i32
    %c0_i32_2 = arith.constant 0 : i32
    return %c0_i32, %c0_i32_0, %c0_i32_1 : i32, i32, i32
  }
  func.func @transform_2(%arg0: i32) -> (i32, i32, i32) {
    %c0_i32 = arith.constant 0 : i32
    %c0_i32_0 = arith.constant 0 : i32
    %c0_i32_1 = arith.constant 0 : i32
    %c0_i32_2 = arith.constant 0 : i32
    return %c0_i32, %c0_i32_0, %c0_i32_1 : i32, i32, i32
  }
  func.func @transform_3(%arg0: i32) -> (i32, i32) {
    %c0_i32 = arith.constant 0 : i32
    %c0_i32_0 = arith.constant 0 : i32
    %c0_i32_1 = arith.constant 0 : i32
    return %c0_i32, %c0_i32_0 : i32, i32
  }
  func.func @transform_4(%arg0: i32) -> (i32, i32) {
    %c0_i32 = arith.constant 0 : i32
    %c0_i32_0 = arith.constant 0 : i32
    %c0_i32_1 = arith.constant 0 : i32
    return %c0_i32, %c0_i32_0 : i32, i32
  }
  func.func @transform_5(%arg0: i32) -> (i32, i32, i32) {
    %c0_i32 = arith.constant 0 : i32
    %c0_i32_0 = arith.constant 0 : i32
    %c0_i32_1 = arith.constant 0 : i32
    %c0_i32_2 = arith.constant 0 : i32
    return %c0_i32, %c0_i32_0, %c0_i32_1 : i32, i32, i32
  }
  func.func @transform_6(%arg0: i32) -> (i32, i32) {
    %c0_i32 = arith.constant 0 : i32
    %c0_i32_0 = arith.constant 0 : i32
    %c0_i32_1 = arith.constant 0 : i32
    return %c0_i32, %c0_i32_0 : i32, i32
  }
  func.func @transform_7(%arg0: i32) -> (i32, i32, i32) {
    %c0_i32 = arith.constant 0 : i32
    %c0_i32_0 = arith.constant 0 : i32
    %c0_i32_1 = arith.constant 0 : i32
    %c0_i32_2 = arith.constant 0 : i32
    return %c0_i32, %c0_i32_0, %c0_i32_1 : i32, i32, i32
  }
  func.func @transform_8(%arg0: i32) -> (i32, i32) {
    %c0_i32 = arith.constant 0 : i32
    %c0_i32_0 = arith.constant 0 : i32
    %c0_i32_1 = arith.constant 0 : i32
    return %c0_i32, %c0_i32_0 : i32, i32
  }
  func.func @transform_9(%arg0: i32) -> (i32, i32) {
    %c0_i32 = arith.constant 0 : i32
    %c0_i32_0 = arith.constant 0 : i32
    %c0_i32_1 = arith.constant 0 : i32
    return %c0_i32, %c0_i32_0 : i32, i32
  }
  func.func @transform_10(%arg0: i32) -> (i32, i32) {
    %c0_i32 = arith.constant 0 : i32
    %c0_i32_0 = arith.constant 0 : i32
    %c0_i32_1 = arith.constant 0 : i32
    return %c0_i32, %c0_i32_0 : i32, i32
  }
  func.func @transform_11(%arg0: i32) -> (i32, i32) {
    %c0_i32 = arith.constant 0 : i32
    %c0_i32_0 = arith.constant 0 : i32
    %c0_i32_1 = arith.constant 0 : i32
    return %c0_i32, %c0_i32_0 : i32, i32
  }
  func.func @transform_12(%arg0: i32) -> (i32, i32) {
    %c0_i32 = arith.constant 0 : i32
    %c0_i32_0 = arith.constant 0 : i32
    %c0_i32_1 = arith.constant 0 : i32
    return %c0_i32, %c0_i32_0 : i32, i32
  }
  func.func @transform_13(%arg0: i32) -> (i32, i32) {
    %c0_i32 = arith.constant 0 : i32
    %c0_i32_0 = arith.constant 0 : i32
    %c0_i32_1 = arith.constant 0 : i32
    return %c0_i32, %c0_i32_0 : i32, i32
  }
  func.func @transform_14(%arg0: i32) -> (i32, i32) {
    %c0_i32 = arith.constant 0 : i32
    %c0_i32_0 = arith.constant 0 : i32
    %c0_i32_1 = arith.constant 0 : i32
    return %c0_i32, %c0_i32_0 : i32, i32
  }
  func.func @transform_15(%arg0: i32) -> (i32, i32) {
    %c0_i32 = arith.constant 0 : i32
    %c0_i32_0 = arith.constant 0 : i32
    %c0_i32_1 = arith.constant 0 : i32
    return %c0_i32, %c0_i32_0 : i32, i32
  }
  func.func @transform_16(%arg0: i32) -> (i32, i32) {
    %c0_i32 = arith.constant 0 : i32
    %c0_i32_0 = arith.constant 0 : i32
    return %c0_i32, %arg0 : i32, i32
  }
}

</mosaic_0001>

<llo_original>
// kernel: tpu_custom_call.1
$region0: #{tpu_custom_call.1}
  #allocation0 [shape = 'u32[]', space=smem, size = 0x4, offset = 0x4, fixed_abs, tag = 'smem constant byte address 0x4 - core index']
  #allocation1 [shape = 'u32[144,128]{1,0:T(1,128)}', space=vmem, size = 0x12000, scoped, tag = 'internal scratch']
  %s0 = inlined_call_operand.hbm [shape: f32[8,256], index: 0, kind: input, shape index: {}]
  %s1 = inlined_call_operand.hbm [shape: f32[8,256], index: 1, kind: output, shape index: {}]
  %s2 = sld [smem:[#allocation0]]
  $region18: #{tpu_custom_call.1} parent=0
    _
  %s4 = ssub.s32 1, %s2
  %s5 = scalar_select 0, %s4, %s2
  $region1: #{tpu_custom_call.1} parent=0
    #allocation2 [shape = 'u8[8192]{0}', space=vmem, size = 0x2000, scoped, tag = 'input window, operand 0, single buffered']
    #allocation3 [shape = 's32[1]{0}', space=sflag, size = 0x4, scoped, tag = 'scoped memory for tpu_custom_call.1']
    #allocation4 [shape = 's32[1]{0}', space=sflag, size = 0x4, scoped, tag = 'scoped memory for tpu_custom_call.1']
    #allocation5 [shape = 'u8[8192]{0}', space=vmem, size = 0x2000, scoped, tag = 'output window, operand 0, single buffered']
    %6 = vsyncpa [#allocation3], 0
    %7 = vsyncpa [#allocation4], 0
    // Predicated region
    $region2: #{tpu_custom_call.1} parent=1 // pred_check
      _
    $region3: #{tpu_custom_call.1} parent=1 // pred_check_branch
      %9 = sbr.rel (0) target = $region5
    $region4: #{tpu_custom_call.1} parent=1 // pred_region
      %s11 = ssub.s32 256, 256
      %12 = vsyncadd [#allocation3], %s11
      %s14 = sshll.u32 [#allocation2], 4
      %s15 = int_to_ptr.vmem [resolvable:$true] %s14
      %17 = dma.hbm_to_vmem [thread:$0]  %s0, 256, %s15, [#allocation3]
    $region5: #{tpu_custom_call.1} parent=1 // pred_fallthru
      _
    // Predicated region
    $region6: #{tpu_custom_call.1} parent=1 // pred_check
      _
    $region7: #{tpu_custom_call.1} parent=1 // pred_check_branch
      %19 = sbr.rel (0) target = $region9
    $region8: #{tpu_custom_call.1} parent=1 // pred_region
      %20 = dma.done [#allocation3], 256
    $region9: #{tpu_custom_call.1} parent=1 // pred_fallthru
      _
    %v21 = vld [vmem:[#allocation2] sm:$0xff]
    %v22 = vld [vmem:[#allocation2 + $0x8] sm:$0xff]
    %23 = vrot.lane.b32.xlu0 %v21, 3
    %v24 = vpop.permute.xlu0 %23
    %25 = vrot.lane.b32.xlu0 %v22, 3
    %v26 = vpop.permute.xlu0 %25
    %v27 = vlaneseq
    %v28 = vand.u32 %v27, 127
    %vm29 = vcmp.lt.s32.totalorder %v28, 3
    %v30 = vsel %vm29, %v24, %v26
    %v31 = vsel %vm29, %v26, %v24
    %32 = vst [vmem:[#allocation5] sm:$0xff] %v31
    %33 = vst [vmem:[#allocation5 + $0x8] sm:$0xff] %v30
    // Predicated region
    $region10: #{tpu_custom_call.1} parent=1 // pred_check
      _
    $region11: #{tpu_custom_call.1} parent=1 // pred_check_branch
      %35 = sbr.rel (0) target = $region13
    $region12: #{tpu_custom_call.1} parent=1 // pred_region
      %s37 = ssub.s32 256, 256
      %38 = vsyncadd [#allocation4], %s37
      %s40 = sshll.u32 [#allocation5], 4
      %s41 = int_to_ptr.vmem [resolvable:$true] %s40
      %43 = dma.vmem_to_hbm [thread:$0]  %s41, 256, %s1, [#allocation4]
    $region13: #{tpu_custom_call.1} parent=1 // pred_fallthru
      _
    // Predicated region
    $region14: #{tpu_custom_call.1} parent=1 // pred_check
      _
    $region15: #{tpu_custom_call.1} parent=1 // pred_check_branch
      %45 = sbr.rel (0) target = $region17
    $region16: #{tpu_custom_call.1} parent=1 // pred_region
      %46 = dma.done [#allocation4], 256
    $region17: #{tpu_custom_call.1} parent=1 // pred_fallthru
      _
    %47 = vsyncpa [#allocation3], 1
    %48 = vsyncpa [#allocation4], 1

// kernel: tpu_custom_call.1
$region0: #{tpu_custom_call.1}
  #allocation0 [shape = 'u32[]', space=smem, size = 0x4, offset = 0x4, fixed_abs, tag = 'smem constant byte address 0x4 - core index']
  #allocation1 [shape = 'u32[144,128]{1,0:T(1,128)}', space=vmem, size = 0x12000, scoped, tag = 'internal scratch']
  %s0 = inlined_call_operand.vmem [shape: f32[16,512], index: 0, kind: input, shape index: {}]
  %s1 = inlined_call_operand.vmem [shape: f32[9,1,512], index: 1, kind: input, shape index: {}]
  %s2 = inlined_call_operand.vmem [shape: f32[9,1,512], index: 2, kind: input, shape index: {}]
  %s3 = inlined_call_operand.vmem [shape: f32[8,72], index: 3, kind: input, shape index: {}]
  %s4 = inlined_call_operand.vmem [shape: f32[8,1], index: 4, kind: input, shape index: {}]
  %s5 = inlined_call_operand.vmem [shape: f32[9,8,1], index: 5, kind: input, shape index: {}]
  %s6 = inlined_call_operand.vmem [shape: f32[8,1], index: 6, kind: input, shape index: {}]
  %s7 = inlined_call_operand.vmem [shape: f32[9,8,1], index: 7, kind: input, shape index: {}]
  %s8 = inlined_call_operand.vmem [shape: f32[8,1], index: 8, kind: input, shape index: {}]
  %s9 = inlined_call_operand.vmem [shape: f32[8,1], index: 9, kind: input, shape index: {}]
  %s10 = inlined_call_operand.vmem [shape: f32[8,1], index: 10, kind: input, shape index: {}]
  %s11 = inlined_call_operand.vmem [shape: f32[32,24], index: 11, kind: input, shape index: {}]
  %s12 = inlined_call_operand.vmem [shape: f32[16,1], index: 12, kind: input, shape index: {}]
  %s13 = inlined_call_operand.vmem [shape: f32[16,1], index: 13, kind: input, shape index: {}]
  %s14 = inlined_call_operand.vmem [shape: f32[16,4], index: 14, kind: input, shape index: {}]
  %s15 = inlined_call_operand.vmem [shape: f32[16,4], index: 15, kind: input, shape index: {}]
  %s16 = inlined_call_operand.hbm [shape: f32[16,512], index: 16, kind: output, shape index: {}]
  %s17 = sld [smem:[#allocation0]]
  $region74: #{tpu_custom_call.1} parent=0
    _
  %s19 = ssub.s32 1, %s17
  %s20 = scalar_select 0, %s19, %s17
  $region1: #{tpu_custom_call.1} parent=0
    #allocation2 [shape = 'u8[32768]{0}', space=vmem, size = 0x8000, scoped, tag = 'output window, operand 0, single buffered']
    #allocation3 [shape = 's32[1]{0}', space=sflag, size = 0x4, scoped, tag = 'scoped memory for tpu_custom_call.1']
    %21 = vsyncpa [#allocation3], 0
    // Predicated region
    $region2: #{tpu_custom_call.1} parent=1 // pred_check
      _
    $region3: #{tpu_custom_call.1} parent=1 // pred_check_branch
      %23 = sbr.rel (0) target = $region5
    $region4: #{tpu_custom_call.1} parent=1 // pred_region
      _
    $region5: #{tpu_custom_call.1} parent=1 // pred_fallthru
      _
    // Predicated region
    $region6: #{tpu_custom_call.1} parent=1 // pred_check
      _
    $region7: #{tpu_custom_call.1} parent=1 // pred_check_branch
      %25 = sbr.rel (0) target = $region9
    $region8: #{tpu_custom_call.1} parent=1 // pred_region
      _
    $region9: #{tpu_custom_call.1} parent=1 // pred_fallthru
      _
    // Predicated region
    $region10: #{tpu_custom_call.1} parent=1 // pred_check
      _
    $region11: #{tpu_custom_call.1} parent=1 // pred_check_branch
      %27 = sbr.rel (0) target = $region13
    $region12: #{tpu_custom_call.1} parent=1 // pred_region
      _
    $region13: #{tpu_custom_call.1} parent=1 // pred_fallthru
      _
    // Predicated region
    $region14: #{tpu_custom_call.1} parent=1 // pred_check
      _
    $region15: #{tpu_custom_call.1} parent=1 // pred_check_branch
      %29 = sbr.rel (0) target = $region17
    $region16: #{tpu_custom_call.1} parent=1 // pred_region
      _
    $region17: #{tpu_custom_call.1} parent=1 // pred_fallthru
      _
    // Predicated region
    $region18: #{tpu_custom_call.1} parent=1 // pred_check
      _
    $region19: #{tpu_custom_call.1} parent=1 // pred_check_branch
      %31 = sbr.rel (0) target = $region21
    $region20: #{tpu_custom_call.1} parent=1 // pred_region
      _
    $region21: #{tpu_custom_call.1} parent=1 // pred_fallthru
      _
    // Predicated region
    $region22: #{tpu_custom_call.1} parent=1 // pred_check
      _
    $region23: #{tpu_custom_call.1} parent=1 // pred_check_branch
      %33 = sbr.rel (0) target = $region25
    $region24: #{tpu_custom_call.1} parent=1 // pred_region
      _
    $region25: #{tpu_custom_call.1} parent=1 // pred_fallthru
      _
    // Predicated region
    $region26: #{tpu_custom_call.1} parent=1 // pred_check
      _
    $region27: #{tpu_custom_call.1} parent=1 // pred_check_branch
      %35 = sbr.rel (0) target = $region29
    $region28: #{tpu_custom_call.1} parent=1 // pred_region
      _
    $region29: #{tpu_custom_call.1} parent=1 // pred_fallthru
      _
    // Predicated region
    $region30: #{tpu_custom_call.1} parent=1 // pred_check
      _
    $region31: #{tpu_custom_call.1} parent=1 // pred_check_branch
      %37 = sbr.rel (0) target = $region33
    $region32: #{tpu_custom_call.1} parent=1 // pred_region
      _
    $region33: #{tpu_custom_call.1} parent=1 // pred_fallthru
      _
    // Predicated region
    $region34: #{tpu_custom_call.1} parent=1 // pred_check
      _
    $region35: #{tpu_custom_call.1} parent=1 // pred_check_branch
      %39 = sbr.rel (0) target = $region37
    $region36: #{tpu_custom_call.1} parent=1 // pred_region
      _
    $region37: #{tpu_custom_call.1} parent=1 // pred_fallthru
      _
    // Predicated region
    $region38: #{tpu_custom_call.1} parent=1 // pred_check
      _
    $region39: #{tpu_custom_call.1} parent=1 // pred_check_branch
      %41 = sbr.rel (0) target = $region41
    $region40: #{tpu_custom_call.1} parent=1 // pred_region
      _
    $region41: #{tpu_custom_call.1} parent=1 // pred_fallthru
      _
    // Predicated region
    $region42: #{tpu_custom_call.1} parent=1 // pred_check
      _
    $region43: #{tpu_custom_call.1} parent=1 // pred_check_branch
      %43 = sbr.rel (0) target = $region45
    $region44: #{tpu_custom_call.1} parent=1 // pred_region
      _
    $region45: #{tpu_custom_call.1} parent=1 // pred_fallthru
      _
    // Predicated region
    $region46: #{tpu_custom_call.1} parent=1 // pred_check
      _
    $region47: #{tpu_custom_call.1} parent=1 // pred_check_branch
      %45 = sbr.rel (0) target = $region49
    $region48: #{tpu_custom_call.1} parent=1 // pred_region
      _
    $region49: #{tpu_custom_call.1} parent=1 // pred_fallthru
      _
    // Predicated region
    $region50: #{tpu_custom_call.1} parent=1 // pred_check
      _
    $region51: #{tpu_custom_call.1} parent=1 // pred_check_branch
      %47 = sbr.rel (0) target = $region53
    $region52: #{tpu_custom_call.1} parent=1 // pred_region
      _
    $region53: #{tpu_custom_call.1} parent=1 // pred_fallthru
      _
    // Predicated region
    $region54: #{tpu_custom_call.1} parent=1 // pred_check
      _
    $region55: #{tpu_custom_call.1} parent=1 // pred_check_branch
      %49 = sbr.rel (0) target = $region57
    $region56: #{tpu_custom_call.1} parent=1 // pred_region
      _
    $region57: #{tpu_custom_call.1} parent=1 // pred_fallthru
      _
    // Predicated region
    $region58: #{tpu_custom_call.1} parent=1 // pred_check
      _
    $region59: #{tpu_custom_call.1} parent=1 // pred_check_branch
      %51 = sbr.rel (0) target = $region61
    $region60: #{tpu_custom_call.1} parent=1 // pred_region
      _
    $region61: #{tpu_custom_call.1} parent=1 // pred_fallthru
      _
    // Predicated region
    $region62: #{tpu_custom_call.1} parent=1 // pred_check
      _
    $region63: #{tpu_custom_call.1} parent=1 // pred_check_branch
      %53 = sbr.rel (0) target = $region65
    $region64: #{tpu_custom_call.1} parent=1 // pred_region
      _
    $region65: #{tpu_custom_call.1} parent=1 // pred_fallthru
      _
    %v54 = vld [vmem:[%s0] sm:$0xff]
    %v55 = vld [vmem:[%s0 + $0x8] sm:$0xff]
    %v56 = vld [vmem:[%s0 + $0x10] sm:$0xff]
    %v57 = vld [vmem:[%s0 + $0x18] sm:$0xff]
    %v58 = vld [vmem:[%s0 + $0x20] sm:$0xff]
    %v59 = vld [vmem:[%s0 + $0x28] sm:$0xff]
    %v60 = vld [vmem:[%s0 + $0x30] sm:$0xff]
    %v61 = vld [vmem:[%s0 + $0x38] sm:$0xff]
    %63 = vrot.lane.b32.xlu0 %v61, 17
    %v64 = vpop.permute.xlu0 %63
    %69 = vrot.lane.b32.xlu0 %v58, 17
    %v70 = vpop.permute.xlu0 %69
    %71 = vrot.lane.b32.xlu0 %v59, 17
    %v72 = vpop.permute.xlu0 %71
    %73 = vrot.lane.b32.xlu0 %v60, 17
    %v74 = vpop.permute.xlu0 %73
    %vm75 = vcmask 138240
    %v76 = vsel %vm75, %v70, %v72
    %v77 = vsel %vm75, %v72, %v74
    %v78 = vsel %vm75, %v74, %v64
    %v83 = vsel %vm75, %v64, %v70
    %v84 = vld [vmem:[%s1] sm:$0xf]
    %v86 = vlaneseq
    %v87 = vshrl.u32 %v86, 7
    %v88 = vsub.s32 0, %v87
    %v89 = vrot.slane %v84, %v88
    %v90 = vlaneseq
    %v91 = vshrl.u32 %v90, 7
    %v92 = vsub.s32 1, %v91
    %v93 = vrot.slane %v84, %v92
    %v94 = vlaneseq
    %v95 = vshrl.u32 %v94, 7
    %v96 = vsub.s32 2, %v95
    %v97 = vrot.slane %v84, %v96
    %v98 = vlaneseq
    %v99 = vshrl.u32 %v98, 7
    %v100 = vsub.s32 3, %v99
    %v101 = vrot.slane %v84, %v100
    %v106 = vmul.f32 %v83, %v89
    %v107 = vmul.f32 %v76, %v93
    %v108 = vmul.f32 %v77, %v97
    %v109 = vmul.f32 %v78, %v101
    %110 = vrot.lane.b32.xlu0 %v61, 16
    %v111 = vpop.permute.xlu0 %110
    %113 = vrot.lane.b32.xlu0 %v58, 16
    %v114 = vpop.permute.xlu0 %113
    %115 = vrot.lane.b32.xlu0 %v59, 16
    %v116 = vpop.permute.xlu0 %115
    %117 = vrot.lane.b32.xlu0 %v60, 16
    %v118 = vpop.permute.xlu0 %117
    %vm119 = vcmask 130048
    %v120 = vsel %vm119, %v114, %v116
    %v121 = vsel %vm119, %v116, %v118
    %v122 = vsel %vm119, %v118, %v111
    %v127 = vsel %vm119, %v111, %v114
    %s128 = scalar_lea.vmem %s1, 4
    %v129 = vld [vmem:[%s128] sm:$0xf]
    %v131 = vlaneseq
    %v132 = vshrl.u32 %v131, 7
    %v133 = vsub.s32 0, %v132
    %v134 = vrot.slane %v129, %v133
    %v135 = vlaneseq
    %v136 = vshrl.u32 %v135, 7
    %v137 = vsub.s32 1, %v136
    %v138 = vrot.slane %v129, %v137
    %v139 = vlaneseq
    %v140 = vshrl.u32 %v139, 7
    %v141 = vsub.s32 2, %v140
    %v142 = vrot.slane %v129, %v141
    %v143 = vlaneseq
    %v144 = vshrl.u32 %v143, 7
    %v145 = vsub.s32 3, %v144
    %v146 = vrot.slane %v129, %v145
    %v151 = vmul.f32 %v127, %v134
    %v152 = vmul.f32 %v120, %v138
    %v153 = vmul.f32 %v121, %v142
    %v154 = vmul.f32 %v122, %v146
    %155 = vrot.lane.b32.xlu0 %v61, 15
    %v156 = vpop.permute.xlu0 %155
    %158 = vrot.lane.b32.xlu0 %v58, 15
    %v159 = vpop.permute.xlu0 %158
    %160 = vrot.lane.b32.xlu0 %v59, 15
    %v161 = vpop.permute.xlu0 %160
    %162 = vrot.lane.b32.xlu0 %v60, 15
    %v163 = vpop.permute.xlu0 %162
    %vm164 = vcmask 121856
    %v165 = vsel %vm164, %v159, %v161
    %v166 = vsel %vm164, %v161, %v163
    %v167 = vsel %vm164, %v163, %v156
    %v172 = vsel %vm164, %v156, %v159
    %s173 = scalar_lea.vmem %s1, 8
    %v174 = vld [vmem:[%s173] sm:$0xf]
    %v176 = vlaneseq
    %v177 = vshrl.u32 %v176, 7
    %v178 = vsub.s32 0, %v177
    %v179 = vrot.slane %v174, %v178
    %v180 = vlaneseq
    %v181 = vshrl.u32 %v180, 7
    %v182 = vsub.s32 1, %v181
    %v183 = vrot.slane %v174, %v182
    %v184 = vlaneseq
    %v185 = vshrl.u32 %v184, 7
    %v186 = vsub.s32 2, %v185
    %v187 = vrot.slane %v174, %v186
    %v188 = vlaneseq
    %v189 = vshrl.u32 %v188, 7
    %v190 = vsub.s32 3, %v189
    %v191 = vrot.slane %v174, %v190
    %v196 = vmul.f32 %v172, %v179
    %v197 = vmul.f32 %v165, %v183
    %v198 = vmul.f32 %v166, %v187
    %v199 = vmul.f32 %v167, %v191
    %200 = vrot.lane.b32.xlu0 %v61, 1
    %v201 = vpop.permute.xlu0 %200
    %203 = vrot.lane.b32.xlu0 %v58, 1
    %v204 = vpop.permute.xlu0 %203
    %205 = vrot.lane.b32.xlu0 %v59, 1
    %v206 = vpop.permute.xlu0 %205
    %207 = vrot.lane.b32.xlu0 %v60, 1
    %v208 = vpop.permute.xlu0 %207
    %vm209 = vcmask 7168
    %v210 = vsel %vm209, %v204, %v206
    %v211 = vsel %vm209, %v206, %v208
    %v212 = vsel %vm209, %v208, %v201
    %v217 = vsel %vm209, %v201, %v204
    %s218 = scalar_lea.vmem %s1, 12
    %v219 = vld [vmem:[%s218] sm:$0xf]
    %v221 = vlaneseq
    %v222 = vshrl.u32 %v221, 7
    %v223 = vsub.s32 0, %v222
    %v224 = vrot.slane %v219, %v223
    %v225 = vlaneseq
    %v226 = vshrl.u32 %v225, 7
    %v227 = vsub.s32 1, %v226
    %v228 = vrot.slane %v219, %v227
    %v229 = vlaneseq
    %v230 = vshrl.u32 %v229, 7
    %v231 = vsub.s32 2, %v230
    %v232 = vrot.slane %v219, %v231
    %v233 = vlaneseq
    %v234 = vshrl.u32 %v233, 7
    %v235 = vsub.s32 3, %v234
    %v236 = vrot.slane %v219, %v235
    %v241 = vmul.f32 %v217, %v224
    %v242 = vmul.f32 %v210, %v228
    %v243 = vmul.f32 %v211, %v232
    %v244 = vmul.f32 %v212, %v236
    %245 = vrot.lane.b32.xlu0 %v58, 127
    %v246 = vpop.permute.xlu0 %245
    %247 = vrot.lane.b32.xlu0 %v59, 127
    %v248 = vpop.permute.xlu0 %247
    %249 = vrot.lane.b32.xlu0 %v60, 127
    %v250 = vpop.permute.xlu0 %249
    %251 = vrot.lane.b32.xlu0 %v61, 127
    %v252 = vpop.permute.xlu0 %251
    %vm253 = vcmask 1039360
    %v254 = vsel %vm253, %v246, %v248
    %v255 = vsel %vm253, %v248, %v250
    %v256 = vsel %vm253, %v250, %v252
    %v262 = vsel %vm253, %v252, %v246
    %s263 = scalar_lea.vmem %s1, 20
    %v264 = vld [vmem:[%s263] sm:$0xf]
    %v266 = vlaneseq
    %v267 = vshrl.u32 %v266, 7
    %v268 = vsub.s32 0, %v267
    %v269 = vrot.slane %v264, %v268
    %v270 = vlaneseq
    %v271 = vshrl.u32 %v270, 7
    %v272 = vsub.s32 1, %v271
    %v273 = vrot.slane %v264, %v272
    %v274 = vlaneseq
    %v275 = vshrl.u32 %v274, 7
    %v276 = vsub.s32 2, %v275
    %v277 = vrot.slane %v264, %v276
    %v278 = vlaneseq
    %v279 = vshrl.u32 %v278, 7
    %v280 = vsub.s32 3, %v279
    %v281 = vrot.slane %v264, %v280
    %v286 = vmul.f32 %v254, %v269
    %v287 = vmul.f32 %v255, %v273
    %v288 = vmul.f32 %v256, %v277
    %v289 = vmul.f32 %v262, %v281
    %290 = vrot.lane.b32.xlu0 %v58, 113
    %v291 = vpop.permute.xlu0 %290
    %292 = vrot.lane.b32.xlu0 %v59, 113
    %v293 = vpop.permute.xlu0 %292
    %294 = vrot.lane.b32.xlu0 %v60, 113
    %v295 = vpop.permute.xlu0 %294
    %296 = vrot.lane.b32.xlu0 %v61, 113
    %v297 = vpop.permute.xlu0 %296
    %vm298 = vcmask 924672
    %v299 = vsel %vm298, %v291, %v293
    %v300 = vsel %vm298, %v293, %v295
    %v301 = vsel %vm298, %v295, %v297
    %v307 = vsel %vm298, %v297, %v291
    %s308 = scalar_lea.vmem %s1, 24
    %v309 = vld [vmem:[%s308] sm:$0xf]
    %v311 = vlaneseq
    %v312 = vshrl.u32 %v311, 7
    %v313 = vsub.s32 0, %v312
    %v314 = vrot.slane %v309, %v313
    %v315 = vlaneseq
    %v316 = vshrl.u32 %v315, 7
    %v317 = vsub.s32 1, %v316
    %v318 = vrot.slane %v309, %v317
    %v319 = vlaneseq
    %v320 = vshrl.u32 %v319, 7
    %v321 = vsub.s32 2, %v320
    %v322 = vrot.slane %v309, %v321
    %v323 = vlaneseq
    %v324 = vshrl.u32 %v323, 7
    %v325 = vsub.s32 3, %v324
    %v326 = vrot.slane %v309, %v325
    %v331 = vmul.f32 %v299, %v314
    %v332 = vmul.f32 %v300, %v318
    %v333 = vmul.f32 %v301, %v322
    %v334 = vmul.f32 %v307, %v326
    %335 = vrot.lane.b32.xlu0 %v58, 112
    %v336 = vpop.permute.xlu0 %335
    %337 = vrot.lane.b32.xlu0 %v59, 112
    %v338 = vpop.permute.xlu0 %337
    %339 = vrot.lane.b32.xlu0 %v60, 112
    %v340 = vpop.permute.xlu0 %339
    %341 = vrot.lane.b32.xlu0 %v61, 112
    %v342 = vpop.permute.xlu0 %341
    %vm343 = vcmask 916480
    %v344 = vsel %vm343, %v336, %v338
    %v345 = vsel %vm343, %v338, %v340
    %v346 = vsel %vm343, %v340, %v342
    %v352 = vsel %vm343, %v342, %v336
    %s353 = scalar_lea.vmem %s1, 28
    %v354 = vld [vmem:[%s353] sm:$0xf]
    %v356 = vlaneseq
    %v357 = vshrl.u32 %v356, 7
    %v358 = vsub.s32 0, %v357
    %v359 = vrot.slane %v354, %v358
    %v360 = vlaneseq
    %v361 = vshrl.u32 %v360, 7
    %v362 = vsub.s32 1, %v361
    %v363 = vrot.slane %v354, %v362
    %v364 = vlaneseq
    %v365 = vshrl.u32 %v364, 7
    %v366 = vsub.s32 2, %v365
    %v367 = vrot.slane %v354, %v366
    %v368 = vlaneseq
    %v369 = vshrl.u32 %v368, 7
    %v370 = vsub.s32 3, %v369
    %v371 = vrot.slane %v354, %v370
    %v376 = vmul.f32 %v344, %v359
    %v377 = vmul.f32 %v345, %v363
    %v378 = vmul.f32 %v346, %v367
    %v379 = vmul.f32 %v352, %v371
    %380 = vrot.lane.b32.xlu0 %v58, 111
    %v381 = vpop.permute.xlu0 %380
    %382 = vrot.lane.b32.xlu0 %v59, 111
    %v383 = vpop.permute.xlu0 %382
    %384 = vrot.lane.b32.xlu0 %v60, 111
    %v385 = vpop.permute.xlu0 %384
    %386 = vrot.lane.b32.xlu0 %v61, 111
    %v387 = vpop.permute.xlu0 %386
    %vm388 = vcmask 908288
    %v389 = vsel %vm388, %v381, %v383
    %v390 = vsel %vm388, %v383, %v385
    %v391 = vsel %vm388, %v385, %v387
    %v397 = vsel %vm388, %v387, %v381
    %s398 = scalar_lea.vmem %s1, 32
    %v399 = vld [vmem:[%s398] sm:$0xf]
    %v401 = vlaneseq
    %v402 = vshrl.u32 %v401, 7
    %v403 = vsub.s32 0, %v402
    %v404 = vrot.slane %v399, %v403
    %v405 = vlaneseq
    %v406 = vshrl.u32 %v405, 7
    %v407 = vsub.s32 1, %v406
    %v408 = vrot.slane %v399, %v407
    %v409 = vlaneseq
    %v410 = vshrl.u32 %v409, 7
    %v411 = vsub.s32 2, %v410
    %v412 = vrot.slane %v399, %v411
    %v413 = vlaneseq
    %v414 = vshrl.u32 %v413, 7
    %v415 = vsub.s32 3, %v414
    %v416 = vrot.slane %v399, %v415
    %v421 = vmul.f32 %v389, %v404
    %v422 = vmul.f32 %v390, %v408
    %v423 = vmul.f32 %v391, %v412
    %v424 = vmul.f32 %v397, %v416
    %v425 = vld [vmem:[%s3] sm:$0xff]
    %v426 = vld [vmem:[%s4] sm:$0xff]
    %428 = vset.pattern.permute.xlu0 0
    %429 = vperm.xlu0 %428, %v426
    %v430 = vpop.permute.xlu0 %429
    %vm432 = vcmask 588800
    %v434 = vsel %vm432, %v425, 0
    %436 = vmatprep.subr.mxu0 %v107
    %437 = vmatpush1.msra.mxu0 %v106
    %438 = vmatprep.subr.mxu0 %v152
    %439 = vmatpush1.msra.mxu0 %v151
    %440 = vmatprep.subr.mxu0 %v197
    %441 = vmatpush1.msra.mxu0 %v196
    %442 = vmatprep.subr.mxu0 %v242
    %443 = vmatpush1.msra.mxu0 %v241
    %444 = vmatprep.subr.mxu0 %v59
    %445 = vmatpush1.msra.mxu0 %v58
    %446 = vmatprep.subr.mxu0 %v287
    %447 = vmatpush1.msra.mxu0 %v286
    %448 = vmatprep.subr.mxu0 %v332
    %449 = vmatpush1.msra.mxu0 %v331
    %450 = vmatprep.subr.mxu0 %v377
    %451 = vmatpush1.msra.mxu0 %v376
    %452 = vmatprep.subr.mxu0 %v422
    %453 = vmatpush1.msra.mxu0 %v421
    %454 = vmatprep.subr.mxu0 0.0
    %455 = vmatpush1.msra.mxu0 0.0
    %456 = vmatprep.subr.mxu0 0.0
    %457 = vmatpush1.msra.mxu0 0.0
    %458 = vmatprep.subr.mxu0 0.0
    %459 = vmatpush1.msra.mxu0 0.0
    %460 = vmatprep.subr.mxu0 0.0
    %461 = vmatpush1.msra.mxu0 0.0
    %462 = vmatprep.subr.mxu0 0.0
    %463 = vmatpush1.msra.mxu0 0.0
    %464 = vmatprep.subr.mxu0 0.0
    %465 = vmatpush1.msra.mxu0 0.0
    %466 = vmatprep.subr.mxu0 0.0
    %467 = vmatpush1.msra.mxu0 0.0
    %468 = vmatprep.subr.mxu0 0.0
    %469 = vmatpush1.msra.mxu0 0.0
    %470 = vmatprep.subr.mxu0 0.0
    %471 = vmatpush1.msra.mxu0 0.0
    %472 = vmatprep.subr.mxu0 0.0
    %473 = vmatpush1.msra.mxu0 0.0
    %474 = vmatprep.subr.mxu0 0.0
    %475 = vmatpush1.msra.mxu0 0.0
    %476 = vmatprep.subr.mxu0 0.0
    %477 = vmatpush1.msra.mxu0 0.0
    %478 = vmatprep.subr.mxu0 0.0
    %479 = vmatpush1.msra.mxu0 0.0
    %480 = vmatprep.subr.mxu0 0.0
    %481 = vmatpush1.msra.mxu0 0.0
    %482 = vmatprep.subr.mxu0 0.0
    %483 = vmatpush1.msra.mxu0 0.0
    %484 = vmatprep.subr.mxu0 0.0
    %485 = vmatpush1.msra.mxu0 0.0
    %486 = vmatprep.subr.mxu0 0.0
    %487 = vmatpush1.msra.mxu0 0.0
    %488 = vmatprep.subr.mxu0 0.0
    %489 = vmatpush1.msra.mxu0 0.0
    %490 = vmatprep.subr.mxu0 0.0
    %491 = vmatpush1.msra.mxu0 0.0
    %492 = vmatprep.subr.mxu0 0.0
    %493 = vmatpush1.msra.mxu0 0.0
    %494 = vmatprep.subr.mxu0 0.0
    %495 = vmatpush1.msra.mxu0 0.0
    %496 = vmatprep.subr.mxu0 0.0
    %497 = vmatpush1.msra.mxu0 0.0
    %498 = vmatprep.subr.mxu0 0.0
    %499 = vmatpush1.msra.mxu0 0.0
    %500 = vmatprep.mubr.f32.mxu0 0.0
    %501 = vmatmul.mubr.f32.gmra.mrb[0].mxu0 %v434
    %v502 = vpop.f32.mrb[0].mxu0
    %v503 = vadd.f32 %v430, %v502
    %v504 = vpop.f32.mrb[0].mxu0
    %v505 = vadd.f32 %v430, %v504
    %506 = vdwg.mxu0
    %507 = vmatprep.subr.mxu0 %v109
    %508 = vmatpush1.msra.mxu0 %v108
    %509 = vmatprep.subr.mxu0 %v154
    %510 = vmatpush1.msra.mxu0 %v153
    %511 = vmatprep.subr.mxu0 %v199
    %512 = vmatpush1.msra.mxu0 %v198
    %513 = vmatprep.subr.mxu0 %v244
    %514 = vmatpush1.msra.mxu0 %v243
    %515 = vmatprep.subr.mxu0 %v61
    %516 = vmatpush1.msra.mxu0 %v60
    %517 = vmatprep.subr.mxu0 %v289
    %518 = vmatpush1.msra.mxu0 %v288
    %519 = vmatprep.subr.mxu0 %v334
    %520 = vmatpush1.msra.mxu0 %v333
    %521 = vmatprep.subr.mxu0 %v379
    %522 = vmatpush1.msra.mxu0 %v378
    %523 = vmatprep.subr.mxu0 %v424
    %524 = vmatpush1.msra.mxu0 %v423
    %525 = vmatprep.subr.mxu0 0.0
    %526 = vmatpush1.msra.mxu0 0.0
    %527 = vmatprep.subr.mxu0 0.0
    %528 = vmatpush1.msra.mxu0 0.0
    %529 = vmatprep.subr.mxu0 0.0
    %530 = vmatpush1.msra.mxu0 0.0
    %531 = vmatprep.subr.mxu0 0.0
    %532 = vmatpush1.msra.mxu0 0.0
    %533 = vmatprep.subr.mxu0 0.0
    %534 = vmatpush1.msra.mxu0 0.0
    %535 = vmatprep.subr.mxu0 0.0
    %536 = vmatpush1.msra.mxu0 0.0
    %537 = vmatprep.subr.mxu0 0.0
    %538 = vmatpush1.msra.mxu0 0.0
    %539 = vmatprep.subr.mxu0 0.0
    %540 = vmatpush1.msra.mxu0 0.0
    %541 = vmatprep.subr.mxu0 0.0
    %542 = vmatpush1.msra.mxu0 0.0
    %543 = vmatprep.subr.mxu0 0.0
    %544 = vmatpush1.msra.mxu0 0.0
    %545 = vmatprep.subr.mxu0 0.0
    %546 = vmatpush1.msra.mxu0 0.0
    %547 = vmatprep.subr.mxu0 0.0
    %548 = vmatpush1.msra.mxu0 0.0
    %549 = vmatprep.subr.mxu0 0.0
    %550 = vmatpush1.msra.mxu0 0.0
    %551 = vmatprep.subr.mxu0 0.0
    %552 = vmatpush1.msra.mxu0 0.0
    %553 = vmatprep.subr.mxu0 0.0
    %554 = vmatpush1.msra.mxu0 0.0
    %555 = vmatprep.subr.mxu0 0.0
    %556 = vmatpush1.msra.mxu0 0.0
    %557 = vmatprep.subr.mxu0 0.0
    %558 = vmatpush1.msra.mxu0 0.0
    %559 = vmatprep.subr.mxu0 0.0
    %560 = vmatpush1.msra.mxu0 0.0
    %561 = vmatprep.subr.mxu0 0.0
    %562 = vmatpush1.msra.mxu0 0.0
    %563 = vmatprep.subr.mxu0 0.0
    %564 = vmatpush1.msra.mxu0 0.0
    %565 = vmatprep.subr.mxu0 0.0
    %566 = vmatpush1.msra.mxu0 0.0
    %567 = vmatprep.subr.mxu0 0.0
    %568 = vmatpush1.msra.mxu0 0.0
    %569 = vmatprep.subr.mxu0 0.0
    %570 = vmatpush1.msra.mxu0 0.0
    %571 = vmatprep.mubr.f32.mxu0 0.0
    %572 = vmatmul.mubr.f32.gmra.mrb[0].mxu0 %v434
    %v573 = vpop.f32.mrb[0].mxu0
    %v574 = vadd.f32 %v430, %v573
    %v575 = vpop.f32.mrb[0].mxu0
    %v576 = vadd.f32 %v430, %v575
    %577 = vdwg.mxu0
    %vm578 = vcmp.gt.f32.partialorder %v503, 0.0
    %vm579 = vcmp.gt.f32.partialorder %v505, 0.0
    %vm580 = vcmp.gt.f32.partialorder %v574, 0.0
    %vm581 = vcmp.gt.f32.partialorder %v576, 0.0
    %v582 = vmin.f32 %v503, 0.0
    %v583 = vmin.f32 %v505, 0.0
    %v584 = vmin.f32 %v574, 0.0
    %v585 = vmin.f32 %v576, 0.0
    %v586 = vmul.f32 %v582, 1.442695
    %v587 = vpow.pop %v586
    %v588 = vmul.f32 %v583, 1.442695
    %v589 = vpow.pop %v588
    %v590 = vmul.f32 %v584, 1.442695
    %v591 = vpow.pop %v590
    %v592 = vmul.f32 %v585, 1.442695
    %v593 = vpow.pop %v592
    %v594 = vsub.f32 %v587, 1.0
    %v595 = vsub.f32 %v589, 1.0
    %v596 = vsub.f32 %v591, 1.0
    %v597 = vsub.f32 %v593, 1.0
    %v598 = vmul.f32 %v594, 1.6732632
    %v599 = vmul.f32 %v595, 1.6732632
    %v600 = vmul.f32 %v596, 1.6732632
    %v601 = vmul.f32 %v597, 1.6732632
    %v602 = vsel %vm578, %v503, %v598
    %v603 = vsel %vm579, %v505, %v599
    %v604 = vsel %vm580, %v574, %v600
    %v605 = vsel %vm581, %v576, %v601
    %v606 = vmul.f32 %v602, 1.050701
    %v607 = vmul.f32 %v603, 1.050701
    %v608 = vmul.f32 %v604, 1.050701
    %v609 = vmul.f32 %v605, 1.050701
    %611 = vrot.lane.b32.xlu0 %v609, 17
    %v612 = vpop.permute.xlu0 %611
    %617 = vrot.lane.b32.xlu0 %v606, 17
    %v618 = vpop.permute.xlu0 %617
    %619 = vrot.lane.b32.xlu0 %v607, 17
    %v620 = vpop.permute.xlu0 %619
    %621 = vrot.lane.b32.xlu0 %v608, 17
    %v622 = vpop.permute.xlu0 %621
    %v623 = vsel %vm75, %v618, %v620
    %v624 = vsel %vm75, %v620, %v622
    %v625 = vsel %vm75, %v622, %v612
    %v630 = vsel %vm75, %v612, %v618
    %v631 = vmul.f32 %v630, %v89
    %v632 = vmul.f32 %v623, %v93
    %v633 = vmul.f32 %v624, %v97
    %v634 = vmul.f32 %v625, %v101
    %v635 = vld [vmem:[%s5] sm:$0xff]
    %637 = vset.pattern.permute.xlu0 0
    %638 = vperm.xlu0 %637, %v635
    %v639 = vpop.permute.xlu0 %638
    %v641 = vmul.f32 %v639, %v631
    %v642 = vmul.f32 %v639, %v632
    %v643 = vmul.f32 %v639, %v633
    %v644 = vmul.f32 %v639, %v634
    %v645 = vadd.f32 %v641, 0.0
    %v646 = vadd.f32 %v642, 0.0
    %v647 = vadd.f32 %v643, 0.0
    %v648 = vadd.f32 %v644, 0.0
    %649 = vrot.lane.b32.xlu0 %v609, 34
    %v650 = vpop.permute.xlu0 %649
    %652 = vrot.lane.b32.xlu0 %v606, 34
    %v653 = vpop.permute.xlu0 %652
    %654 = vrot.lane.b32.xlu0 %v607, 34
    %v655 = vpop.permute.xlu0 %654
    %656 = vrot.lane.b32.xlu0 %v608, 34
    %v657 = vpop.permute.xlu0 %656
    %vm658 = vcmask 277504
    %v659 = vsel %vm658, %v653, %v655
    %v660 = vsel %vm658, %v655, %v657
    %v661 = vsel %vm658, %v657, %v650
    %v666 = vsel %vm658, %v650, %v653
    %v667 = vld [vmem:[%s2] sm:$0xf]
    %v669 = vlaneseq
    %v670 = vshrl.u32 %v669, 7
    %v671 = vsub.s32 0, %v670
    %v672 = vrot.slane %v667, %v671
    %v673 = vlaneseq
    %v674 = vshrl.u32 %v673, 7
    %v675 = vsub.s32 1, %v674
    %v676 = vrot.slane %v667, %v675
    %v677 = vlaneseq
    %v678 = vshrl.u32 %v677, 7
    %v679 = vsub.s32 2, %v678
    %v680 = vrot.slane %v667, %v679
    %v681 = vlaneseq
    %v682 = vshrl.u32 %v681, 7
    %v683 = vsub.s32 3, %v682
    %v684 = vrot.slane %v667, %v683
    %v689 = vmul.f32 %v666, %v672
    %v690 = vmul.f32 %v659, %v676
    %v691 = vmul.f32 %v660, %v680
    %v692 = vmul.f32 %v661, %v684
    %v693 = vld [vmem:[%s7] sm:$0xff]
    %695 = vset.pattern.permute.xlu0 0
    %696 = vperm.xlu0 %695, %v693
    %v697 = vpop.permute.xlu0 %696
    %v699 = vmul.f32 %v697, %v689
    %v700 = vmul.f32 %v697, %v690
    %v701 = vmul.f32 %v697, %v691
    %v702 = vmul.f32 %v697, %v692
    %v703 = vadd.f32 %v699, 0.0
    %v704 = vadd.f32 %v700, 0.0
    %v705 = vadd.f32 %v701, 0.0
    %v706 = vadd.f32 %v702, 0.0
    %707 = vrot.lane.b32.xlu0 %v609, 16
    %v708 = vpop.permute.xlu0 %707
    %710 = vrot.lane.b32.xlu0 %v606, 16
    %v711 = vpop.permute.xlu0 %710
    %712 = vrot.lane.b32.xlu0 %v607, 16
    %v713 = vpop.permute.xlu0 %712
    %714 = vrot.lane.b32.xlu0 %v608, 16
    %v715 = vpop.permute.xlu0 %714
    %v716 = vsel %vm119, %v711, %v713
    %v717 = vsel %vm119, %v713, %v715
    %v718 = vsel %vm119, %v715, %v708
    %v723 = vsel %vm119, %v708, %v711
    %v724 = vmul.f32 %v723, %v134
    %v725 = vmul.f32 %v716, %v138
    %v726 = vmul.f32 %v717, %v142
    %v727 = vmul.f32 %v718, %v146
    %s728 = scalar_lea.vmem %s5, 8
    %v729 = vld [vmem:[%s728] sm:$0xff]
    %731 = vset.pattern.permute.xlu0 0
    %732 = vperm.xlu0 %731, %v729
    %v733 = vpop.permute.xlu0 %732
    %v735 = vmul.f32 %v733, %v724
    %v736 = vmul.f32 %v733, %v725
    %v737 = vmul.f32 %v733, %v726
    %v738 = vmul.f32 %v733, %v727
    %v739 = vadd.f32 %v645, %v735
    %v740 = vadd.f32 %v646, %v736
    %v741 = vadd.f32 %v647, %v737
    %v742 = vadd.f32 %v648, %v738
    %743 = vrot.lane.b32.xlu0 %v609, 32
    %v744 = vpop.permute.xlu0 %743
    %746 = vrot.lane.b32.xlu0 %v606, 32
    %v747 = vpop.permute.xlu0 %746
    %748 = vrot.lane.b32.xlu0 %v607, 32
    %v749 = vpop.permute.xlu0 %748
    %750 = vrot.lane.b32.xlu0 %v608, 32
    %v751 = vpop.permute.xlu0 %750
    %vm752 = vcmask 261120
    %v753 = vsel %vm752, %v747, %v749
    %v754 = vsel %vm752, %v749, %v751
    %v755 = vsel %vm752, %v751, %v744
    %v760 = vsel %vm752, %v744, %v747
    %s761 = scalar_lea.vmem %s2, 4
    %v762 = vld [vmem:[%s761] sm:$0xf]
    %v764 = vlaneseq
    %v765 = vshrl.u32 %v764, 7
    %v766 = vsub.s32 0, %v765
    %v767 = vrot.slane %v762, %v766
    %v768 = vlaneseq
    %v769 = vshrl.u32 %v768, 7
    %v770 = vsub.s32 1, %v769
    %v771 = vrot.slane %v762, %v770
    %v772 = vlaneseq
    %v773 = vshrl.u32 %v772, 7
    %v774 = vsub.s32 2, %v773
    %v775 = vrot.slane %v762, %v774
    %v776 = vlaneseq
    %v777 = vshrl.u32 %v776, 7
    %v778 = vsub.s32 3, %v777
    %v779 = vrot.slane %v762, %v778
    %v784 = vmul.f32 %v760, %v767
    %v785 = vmul.f32 %v753, %v771
    %v786 = vmul.f32 %v754, %v775
    %v787 = vmul.f32 %v755, %v779
    %s788 = scalar_lea.vmem %s7, 8
    %v789 = vld [vmem:[%s788] sm:$0xff]
    %791 = vset.pattern.permute.xlu0 0
    %792 = vperm.xlu0 %791, %v789
    %v793 = vpop.permute.xlu0 %792
    %v795 = vmul.f32 %v793, %v784
    %v796 = vmul.f32 %v793, %v785
    %v797 = vmul.f32 %v793, %v786
    %v798 = vmul.f32 %v793, %v787
    %v799 = vadd.f32 %v703, %v795
    %v800 = vadd.f32 %v704, %v796
    %v801 = vadd.f32 %v705, %v797
    %v802 = vadd.f32 %v706, %v798
    %803 = vrot.lane.b32.xlu0 %v609, 15
    %v804 = vpop.permute.xlu0 %803
    %806 = vrot.lane.b32.xlu0 %v606, 15
    %v807 = vpop.permute.xlu0 %806
    %808 = vrot.lane.b32.xlu0 %v607, 15
    %v809 = vpop.permute.xlu0 %808
    %810 = vrot.lane.b32.xlu0 %v608, 15
    %v811 = vpop.permute.xlu0 %810
    %v812 = vsel %vm164, %v807, %v809
    %v813 = vsel %vm164, %v809, %v811
    %v814 = vsel %vm164, %v811, %v804
    %v819 = vsel %vm164, %v804, %v807
    %v820 = vmul.f32 %v819, %v179
    %v821 = vmul.f32 %v812, %v183
    %v822 = vmul.f32 %v813, %v187
    %v823 = vmul.f32 %v814, %v191
    %s824 = scalar_lea.vmem %s5, 16
    %v825 = vld [vmem:[%s824] sm:$0xff]
    %827 = vset.pattern.permute.xlu0 0
    %828 = vperm.xlu0 %827, %v825
    %v829 = vpop.permute.xlu0 %828
    %v831 = vmul.f32 %v829, %v820
    %v832 = vmul.f32 %v829, %v821
    %v833 = vmul.f32 %v829, %v822
    %v834 = vmul.f32 %v829, %v823
    %v835 = vadd.f32 %v739, %v831
    %v836 = vadd.f32 %v740, %v832
    %v837 = vadd.f32 %v741, %v833
    %v838 = vadd.f32 %v742, %v834
    %839 = vrot.lane.b32.xlu0 %v609, 30
    %v840 = vpop.permute.xlu0 %839
    %842 = vrot.lane.b32.xlu0 %v606, 30
    %v843 = vpop.permute.xlu0 %842
    %844 = vrot.lane.b32.xlu0 %v607, 30
    %v845 = vpop.permute.xlu0 %844
    %846 = vrot.lane.b32.xlu0 %v608, 30
    %v847 = vpop.permute.xlu0 %846
    %vm848 = vcmask 244736
    %v849 = vsel %vm848, %v843, %v845
    %v850 = vsel %vm848, %v845, %v847
    %v851 = vsel %vm848, %v847, %v840
    %v856 = vsel %vm848, %v840, %v843
    %s857 = scalar_lea.vmem %s2, 8
    %v858 = vld [vmem:[%s857] sm:$0xf]
    %v860 = vlaneseq
    %v861 = vshrl.u32 %v860, 7
    %v862 = vsub.s32 0, %v861
    %v863 = vrot.slane %v858, %v862
    %v864 = vlaneseq
    %v865 = vshrl.u32 %v864, 7
    %v866 = vsub.s32 1, %v865
    %v867 = vrot.slane %v858, %v866
    %v868 = vlaneseq
    %v869 = vshrl.u32 %v868, 7
    %v870 = vsub.s32 2, %v869
    %v871 = vrot.slane %v858, %v870
    %v872 = vlaneseq
    %v873 = vshrl.u32 %v872, 7
    %v874 = vsub.s32 3, %v873
    %v875 = vrot.slane %v858, %v874
    %v880 = vmul.f32 %v856, %v863
    %v881 = vmul.f32 %v849, %v867
    %v882 = vmul.f32 %v850, %v871
    %v883 = vmul.f32 %v851, %v875
    %s884 = scalar_lea.vmem %s7, 16
    %v885 = vld [vmem:[%s884] sm:$0xff]
    %887 = vset.pattern.permute.xlu0 0
    %888 = vperm.xlu0 %887, %v885
    %v889 = vpop.permute.xlu0 %888
    %v891 = vmul.f32 %v889, %v880
    %v892 = vmul.f32 %v889, %v881
    %v893 = vmul.f32 %v889, %v882
    %v894 = vmul.f32 %v889, %v883
    %v895 = vadd.f32 %v799, %v891
    %v896 = vadd.f32 %v800, %v892
    %v897 = vadd.f32 %v801, %v893
    %v898 = vadd.f32 %v802, %v894
    %899 = vrot.lane.b32.xlu0 %v609, 1
    %v900 = vpop.permute.xlu0 %899
    %902 = vrot.lane.b32.xlu0 %v606, 1
    %v903 = vpop.permute.xlu0 %902
    %904 = vrot.lane.b32.xlu0 %v607, 1
    %v905 = vpop.permute.xlu0 %904
    %906 = vrot.lane.b32.xlu0 %v608, 1
    %v907 = vpop.permute.xlu0 %906
    %v908 = vsel %vm209, %v903, %v905
    %v909 = vsel %vm209, %v905, %v907
    %v910 = vsel %vm209, %v907, %v900
    %v915 = vsel %vm209, %v900, %v903
    %v916 = vmul.f32 %v915, %v224
    %v917 = vmul.f32 %v908, %v228
    %v918 = vmul.f32 %v909, %v232
    %v919 = vmul.f32 %v910, %v236
    %s920 = scalar_lea.vmem %s5, 24
    %v921 = vld [vmem:[%s920] sm:$0xff]
    %923 = vset.pattern.permute.xlu0 0
    %924 = vperm.xlu0 %923, %v921
    %v925 = vpop.permute.xlu0 %924
    %v927 = vmul.f32 %v925, %v916
    %v928 = vmul.f32 %v925, %v917
    %v929 = vmul.f32 %v925, %v918
    %v930 = vmul.f32 %v925, %v919
    %v931 = vadd.f32 %v835, %v927
    %v932 = vadd.f32 %v836, %v928
    %v933 = vadd.f32 %v837, %v929
    %v934 = vadd.f32 %v838, %v930
    %935 = vrot.lane.b32.xlu0 %v609, 2
    %v936 = vpop.permute.xlu0 %935
    %938 = vrot.lane.b32.xlu0 %v606, 2
    %v939 = vpop.permute.xlu0 %938
    %940 = vrot.lane.b32.xlu0 %v607, 2
    %v941 = vpop.permute.xlu0 %940
    %942 = vrot.lane.b32.xlu0 %v608, 2
    %v943 = vpop.permute.xlu0 %942
    %vm944 = vcmask 15360
    %v945 = vsel %vm944, %v939, %v941
    %v946 = vsel %vm944, %v941, %v943
    %v947 = vsel %vm944, %v943, %v936
    %v952 = vsel %vm944, %v936, %v939
    %s953 = scalar_lea.vmem %s2, 12
    %v954 = vld [vmem:[%s953] sm:$0xf]
    %v956 = vlaneseq
    %v957 = vshrl.u32 %v956, 7
    %v958 = vsub.s32 0, %v957
    %v959 = vrot.slane %v954, %v958
    %v960 = vlaneseq
    %v961 = vshrl.u32 %v960, 7
    %v962 = vsub.s32 1, %v961
    %v963 = vrot.slane %v954, %v962
    %v964 = vlaneseq
    %v965 = vshrl.u32 %v964, 7
    %v966 = vsub.s32 2, %v965
    %v967 = vrot.slane %v954, %v966
    %v968 = vlaneseq
    %v969 = vshrl.u32 %v968, 7
    %v970 = vsub.s32 3, %v969
    %v971 = vrot.slane %v954, %v970
    %v976 = vmul.f32 %v952, %v959
    %v977 = vmul.f32 %v945, %v963
    %v978 = vmul.f32 %v946, %v967
    %v979 = vmul.f32 %v947, %v971
    %s980 = scalar_lea.vmem %s7, 24
    %v981 = vld [vmem:[%s980] sm:$0xff]
    %983 = vset.pattern.permute.xlu0 0
    %984 = vperm.xlu0 %983, %v981
    %v985 = vpop.permute.xlu0 %984
    %v987 = vmul.f32 %v985, %v976
    %v988 = vmul.f32 %v985, %v977
    %v989 = vmul.f32 %v985, %v978
    %v990 = vmul.f32 %v985, %v979
    %v991 = vadd.f32 %v895, %v987
    %v992 = vadd.f32 %v896, %v988
    %v993 = vadd.f32 %v897, %v989
    %v994 = vadd.f32 %v898, %v990
    %s995 = scalar_lea.vmem %s5, 32
    %v996 = vld [vmem:[%s995] sm:$0xff]
    %998 = vset.pattern.permute.xlu0 0
    %999 = vperm.xlu0 %998, %v996
    %v1000 = vpop.permute.xlu0 %999
    %v1002 = vmul.f32 %v1000, %v606
    %v1003 = vmul.f32 %v1000, %v607
    %v1004 = vmul.f32 %v1000, %v608
    %v1005 = vmul.f32 %v1000, %v609
    %v1006 = vadd.f32 %v931, %v1002
    %v1007 = vadd.f32 %v932, %v1003
    %v1008 = vadd.f32 %v933, %v1004
    %v1009 = vadd.f32 %v934, %v1005
    %s1010 = scalar_lea.vmem %s7, 32
    %v1011 = vld [vmem:[%s1010] sm:$0xff]
    %1013 = vset.pattern.permute.xlu0 0
    %1014 = vperm.xlu0 %1013, %v1011
    %v1015 = vpop.permute.xlu0 %1014
    %v1017 = vmul.f32 %v1015, %v606
    %v1018 = vmul.f32 %v1015, %v607
    %v1019 = vmul.f32 %v1015, %v608
    %v1020 = vmul.f32 %v1015, %v609
    %v1021 = vadd.f32 %v991, %v1017
    %v1022 = vadd.f32 %v992, %v1018
    %v1023 = vadd.f32 %v993, %v1019
    %v1024 = vadd.f32 %v994, %v1020
    %1025 = vrot.lane.b32.xlu0 %v606, 127
    %v1026 = vpop.permute.xlu0 %1025
    %1027 = vrot.lane.b32.xlu0 %v607, 127
    %v1028 = vpop.permute.xlu0 %1027
    %1029 = vrot.lane.b32.xlu0 %v608, 127
    %v1030 = vpop.permute.xlu0 %1029
    %1031 = vrot.lane.b32.xlu0 %v609, 127
    %v1032 = vpop.permute.xlu0 %1031
    %v1033 = vsel %vm253, %v1026, %v1028
    %v1034 = vsel %vm253, %v1028, %v1030
    %v1035 = vsel %vm253, %v1030, %v1032
    %v1041 = vsel %vm253, %v1032, %v1026
    %v1042 = vmul.f32 %v1033, %v269
    %v1043 = vmul.f32 %v1034, %v273
    %v1044 = vmul.f32 %v1035, %v277
    %v1045 = vmul.f32 %v1041, %v281
    %s1046 = scalar_lea.vmem %s5, 40
    %v1047 = vld [vmem:[%s1046] sm:$0xff]
    %1049 = vset.pattern.permute.xlu0 0
    %1050 = vperm.xlu0 %1049, %v1047
    %v1051 = vpop.permute.xlu0 %1050
    %v1053 = vmul.f32 %v1051, %v1042
    %v1054 = vmul.f32 %v1051, %v1043
    %v1055 = vmul.f32 %v1051, %v1044
    %v1056 = vmul.f32 %v1051, %v1045
    %v1057 = vadd.f32 %v1006, %v1053
    %v1058 = vadd.f32 %v1007, %v1054
    %v1059 = vadd.f32 %v1008, %v1055
    %v1060 = vadd.f32 %v1009, %v1056
    %1061 = vrot.lane.b32.xlu0 %v606, 126
    %v1062 = vpop.permute.xlu0 %1061
    %1063 = vrot.lane.b32.xlu0 %v607, 126
    %v1064 = vpop.permute.xlu0 %1063
    %1065 = vrot.lane.b32.xlu0 %v608, 126
    %v1066 = vpop.permute.xlu0 %1065
    %1067 = vrot.lane.b32.xlu0 %v609, 126
    %v1068 = vpop.permute.xlu0 %1067
    %vm1069 = vcmask 1031168
    %v1070 = vsel %vm1069, %v1062, %v1064
    %v1071 = vsel %vm1069, %v1064, %v1066
    %v1072 = vsel %vm1069, %v1066, %v1068
    %v1078 = vsel %vm1069, %v1068, %v1062
    %s1079 = scalar_lea.vmem %s2, 20
    %v1080 = vld [vmem:[%s1079] sm:$0xf]
    %v1082 = vlaneseq
    %v1083 = vshrl.u32 %v1082, 7
    %v1084 = vsub.s32 0, %v1083
    %v1085 = vrot.slane %v1080, %v1084
    %v1086 = vlaneseq
    %v1087 = vshrl.u32 %v1086, 7
    %v1088 = vsub.s32 1, %v1087
    %v1089 = vrot.slane %v1080, %v1088
    %v1090 = vlaneseq
    %v1091 = vshrl.u32 %v1090, 7
    %v1092 = vsub.s32 2, %v1091
    %v1093 = vrot.slane %v1080, %v1092
    %v1094 = vlaneseq
    %v1095 = vshrl.u32 %v1094, 7
    %v1096 = vsub.s32 3, %v1095
    %v1097 = vrot.slane %v1080, %v1096
    %v1102 = vmul.f32 %v1070, %v1085
    %v1103 = vmul.f32 %v1071, %v1089
    %v1104 = vmul.f32 %v1072, %v1093
    %v1105 = vmul.f32 %v1078, %v1097
    %s1106 = scalar_lea.vmem %s7, 40
    %v1107 = vld [vmem:[%s1106] sm:$0xff]
    %1109 = vset.pattern.permute.xlu0 0
    %1110 = vperm.xlu0 %1109, %v1107
    %v1111 = vpop.permute.xlu0 %1110
    %v1113 = vmul.f32 %v1111, %v1102
    %v1114 = vmul.f32 %v1111, %v1103
    %v1115 = vmul.f32 %v1111, %v1104
    %v1116 = vmul.f32 %v1111, %v1105
    %v1117 = vadd.f32 %v1021, %v1113
    %v1118 = vadd.f32 %v1022, %v1114
    %v1119 = vadd.f32 %v1023, %v1115
    %v1120 = vadd.f32 %v1024, %v1116
    %1121 = vrot.lane.b32.xlu0 %v606, 113
    %v1122 = vpop.permute.xlu0 %1121
    %1123 = vrot.lane.b32.xlu0 %v607, 113
    %v1124 = vpop.permute.xlu0 %1123
    %1125 = vrot.lane.b32.xlu0 %v608, 113
    %v1126 = vpop.permute.xlu0 %1125
    %1127 = vrot.lane.b32.xlu0 %v609, 113
    %v1128 = vpop.permute.xlu0 %1127
    %v1129 = vsel %vm298, %v1122, %v1124
    %v1130 = vsel %vm298, %v1124, %v1126
    %v1131 = vsel %vm298, %v1126, %v1128
    %v1137 = vsel %vm298, %v1128, %v1122
    %v1138 = vmul.f32 %v1129, %v314
    %v1139 = vmul.f32 %v1130, %v318
    %v1140 = vmul.f32 %v1131, %v322
    %v1141 = vmul.f32 %v1137, %v326
    %s1142 = scalar_lea.vmem %s5, 48
    %v1143 = vld [vmem:[%s1142] sm:$0xff]
    %1145 = vset.pattern.permute.xlu0 0
    %1146 = vperm.xlu0 %1145, %v1143
    %v1147 = vpop.permute.xlu0 %1146
    %v1149 = vmul.f32 %v1147, %v1138
    %v1150 = vmul.f32 %v1147, %v1139
    %v1151 = vmul.f32 %v1147, %v1140
    %v1152 = vmul.f32 %v1147, %v1141
    %v1153 = vadd.f32 %v1057, %v1149
    %v1154 = vadd.f32 %v1058, %v1150
    %v1155 = vadd.f32 %v1059, %v1151
    %v1156 = vadd.f32 %v1060, %v1152
    %1157 = vrot.lane.b32.xlu0 %v606, 98
    %v1158 = vpop.permute.xlu0 %1157
    %1159 = vrot.lane.b32.xlu0 %v607, 98
    %v1160 = vpop.permute.xlu0 %1159
    %1161 = vrot.lane.b32.xlu0 %v608, 98
    %v1162 = vpop.permute.xlu0 %1161
    %1163 = vrot.lane.b32.xlu0 %v609, 98
    %v1164 = vpop.permute.xlu0 %1163
    %vm1165 = vcmask 801792
    %v1166 = vsel %vm1165, %v1158, %v1160
    %v1167 = vsel %vm1165, %v1160, %v1162
    %v1168 = vsel %vm1165, %v1162, %v1164
    %v1174 = vsel %vm1165, %v1164, %v1158
    %s1175 = scalar_lea.vmem %s2, 24
    %v1176 = vld [vmem:[%s1175] sm:$0xf]
    %v1178 = vlaneseq
    %v1179 = vshrl.u32 %v1178, 7
    %v1180 = vsub.s32 0, %v1179
    %v1181 = vrot.slane %v1176, %v1180
    %v1182 = vlaneseq
    %v1183 = vshrl.u32 %v1182, 7
    %v1184 = vsub.s32 1, %v1183
    %v1185 = vrot.slane %v1176, %v1184
    %v1186 = vlaneseq
    %v1187 = vshrl.u32 %v1186, 7
    %v1188 = vsub.s32 2, %v1187
    %v1189 = vrot.slane %v1176, %v1188
    %v1190 = vlaneseq
    %v1191 = vshrl.u32 %v1190, 7
    %v1192 = vsub.s32 3, %v1191
    %v1193 = vrot.slane %v1176, %v1192
    %v1198 = vmul.f32 %v1166, %v1181
    %v1199 = vmul.f32 %v1167, %v1185
    %v1200 = vmul.f32 %v1168, %v1189
    %v1201 = vmul.f32 %v1174, %v1193
    %s1202 = scalar_lea.vmem %s7, 48
    %v1203 = vld [vmem:[%s1202] sm:$0xff]
    %1205 = vset.pattern.permute.xlu0 0
    %1206 = vperm.xlu0 %1205, %v1203
    %v1207 = vpop.permute.xlu0 %1206
    %v1209 = vmul.f32 %v1207, %v1198
    %v1210 = vmul.f32 %v1207, %v1199
    %v1211 = vmul.f32 %v1207, %v1200
    %v1212 = vmul.f32 %v1207, %v1201
    %v1213 = vadd.f32 %v1117, %v1209
    %v1214 = vadd.f32 %v1118, %v1210
    %v1215 = vadd.f32 %v1119, %v1211
    %v1216 = vadd.f32 %v1120, %v1212
    %1217 = vrot.lane.b32.xlu0 %v606, 112
    %v1218 = vpop.permute.xlu0 %1217
    %1219 = vrot.lane.b32.xlu0 %v607, 112
    %v1220 = vpop.permute.xlu0 %1219
    %1221 = vrot.lane.b32.xlu0 %v608, 112
    %v1222 = vpop.permute.xlu0 %1221
    %1223 = vrot.lane.b32.xlu0 %v609, 112
    %v1224 = vpop.permute.xlu0 %1223
    %v1225 = vsel %vm343, %v1218, %v1220
    %v1226 = vsel %vm343, %v1220, %v1222
    %v1227 = vsel %vm343, %v1222, %v1224
    %v1233 = vsel %vm343, %v1224, %v1218
    %v1234 = vmul.f32 %v1225, %v359
    %v1235 = vmul.f32 %v1226, %v363
    %v1236 = vmul.f32 %v1227, %v367
    %v1237 = vmul.f32 %v1233, %v371
    %s1238 = scalar_lea.vmem %s5, 56
    %v1239 = vld [vmem:[%s1238] sm:$0xff]
    %1241 = vset.pattern.permute.xlu0 0
    %1242 = vperm.xlu0 %1241, %v1239
    %v1243 = vpop.permute.xlu0 %1242
    %v1245 = vmul.f32 %v1243, %v1234
    %v1246 = vmul.f32 %v1243, %v1235
    %v1247 = vmul.f32 %v1243, %v1236
    %v1248 = vmul.f32 %v1243, %v1237
    %v1249 = vadd.f32 %v1153, %v1245
    %v1250 = vadd.f32 %v1154, %v1246
    %v1251 = vadd.f32 %v1155, %v1247
    %v1252 = vadd.f32 %v1156, %v1248
    %1253 = vrot.lane.b32.xlu0 %v606, 96
    %v1254 = vpop.permute.xlu0 %1253
    %1255 = vrot.lane.b32.xlu0 %v607, 96
    %v1256 = vpop.permute.xlu0 %1255
    %1257 = vrot.lane.b32.xlu0 %v608, 96
    %v1258 = vpop.permute.xlu0 %1257
    %1259 = vrot.lane.b32.xlu0 %v609, 96
    %v1260 = vpop.permute.xlu0 %1259
    %vm1261 = vcmask 785408
    %v1262 = vsel %vm1261, %v1254, %v1256
    %v1263 = vsel %vm1261, %v1256, %v1258
    %v1264 = vsel %vm1261, %v1258, %v1260
    %v1270 = vsel %vm1261, %v1260, %v1254
    %s1271 = scalar_lea.vmem %s2, 28
    %v1272 = vld [vmem:[%s1271] sm:$0xf]
    %v1274 = vlaneseq
    %v1275 = vshrl.u32 %v1274, 7
    %v1276 = vsub.s32 0, %v1275
    %v1277 = vrot.slane %v1272, %v1276
    %v1278 = vlaneseq
    %v1279 = vshrl.u32 %v1278, 7
    %v1280 = vsub.s32 1, %v1279
    %v1281 = vrot.slane %v1272, %v1280
    %v1282 = vlaneseq
    %v1283 = vshrl.u32 %v1282, 7
    %v1284 = vsub.s32 2, %v1283
    %v1285 = vrot.slane %v1272, %v1284
    %v1286 = vlaneseq
    %v1287 = vshrl.u32 %v1286, 7
    %v1288 = vsub.s32 3, %v1287
    %v1289 = vrot.slane %v1272, %v1288
    %v1294 = vmul.f32 %v1262, %v1277
    %v1295 = vmul.f32 %v1263, %v1281
    %v1296 = vmul.f32 %v1264, %v1285
    %v1297 = vmul.f32 %v1270, %v1289
    %s1298 = scalar_lea.vmem %s7, 56
    %v1299 = vld [vmem:[%s1298] sm:$0xff]
    %1301 = vset.pattern.permute.xlu0 0
    %1302 = vperm.xlu0 %1301, %v1299
    %v1303 = vpop.permute.xlu0 %1302
    %v1305 = vmul.f32 %v1303, %v1294
    %v1306 = vmul.f32 %v1303, %v1295
    %v1307 = vmul.f32 %v1303, %v1296
    %v1308 = vmul.f32 %v1303, %v1297
    %v1309 = vadd.f32 %v1213, %v1305
    %v1310 = vadd.f32 %v1214, %v1306
    %v1311 = vadd.f32 %v1215, %v1307
    %v1312 = vadd.f32 %v1216, %v1308
    %1313 = vrot.lane.b32.xlu0 %v606, 111
    %v1314 = vpop.permute.xlu0 %1313
    %1315 = vrot.lane.b32.xlu0 %v607, 111
    %v1316 = vpop.permute.xlu0 %1315
    %1317 = vrot.lane.b32.xlu0 %v608, 111
    %v1318 = vpop.permute.xlu0 %1317
    %1319 = vrot.lane.b32.xlu0 %v609, 111
    %v1320 = vpop.permute.xlu0 %1319
    %v1321 = vsel %vm388, %v1314, %v1316
    %v1322 = vsel %vm388, %v1316, %v1318
    %v1323 = vsel %vm388, %v1318, %v1320
    %v1329 = vsel %vm388, %v1320, %v1314
    %v1330 = vmul.f32 %v1321, %v404
    %v1331 = vmul.f32 %v1322, %v408
    %v1332 = vmul.f32 %v1323, %v412
    %v1333 = vmul.f32 %v1329, %v416
    %s1334 = scalar_lea.vmem %s5, 64
    %v1335 = vld [vmem:[%s1334] sm:$0xff]
    %1337 = vset.pattern.permute.xlu0 0
    %1338 = vperm.xlu0 %1337, %v1335
    %v1339 = vpop.permute.xlu0 %1338
    %v1341 = vmul.f32 %v1339, %v1330
    %v1342 = vmul.f32 %v1339, %v1331
    %v1343 = vmul.f32 %v1339, %v1332
    %v1344 = vmul.f32 %v1339, %v1333
    %v1345 = vadd.f32 %v1249, %v1341
    %v1346 = vadd.f32 %v1250, %v1342
    %v1347 = vadd.f32 %v1251, %v1343
    %v1348 = vadd.f32 %v1252, %v1344
    %1349 = vrot.lane.b32.xlu0 %v606, 94
    %v1350 = vpop.permute.xlu0 %1349
    %1351 = vrot.lane.b32.xlu0 %v607, 94
    %v1352 = vpop.permute.xlu0 %1351
    %1353 = vrot.lane.b32.xlu0 %v608, 94
    %v1354 = vpop.permute.xlu0 %1353
    %1355 = vrot.lane.b32.xlu0 %v609, 94
    %v1356 = vpop.permute.xlu0 %1355
    %vm1357 = vcmask 769024
    %v1358 = vsel %vm1357, %v1350, %v1352
    %v1359 = vsel %vm1357, %v1352, %v1354
    %v1360 = vsel %vm1357, %v1354, %v1356
    %v1366 = vsel %vm1357, %v1356, %v1350
    %s1367 = scalar_lea.vmem %s2, 32
    %v1368 = vld [vmem:[%s1367] sm:$0xf]
    %v1370 = vlaneseq
    %v1371 = vshrl.u32 %v1370, 7
    %v1372 = vsub.s32 0, %v1371
    %v1373 = vrot.slane %v1368, %v1372
    %v1374 = vlaneseq
    %v1375 = vshrl.u32 %v1374, 7
    %v1376 = vsub.s32 1, %v1375
    %v1377 = vrot.slane %v1368, %v1376
    %v1378 = vlaneseq
    %v1379 = vshrl.u32 %v1378, 7
    %v1380 = vsub.s32 2, %v1379
    %v1381 = vrot.slane %v1368, %v1380
    %v1382 = vlaneseq
    %v1383 = vshrl.u32 %v1382, 7
    %v1384 = vsub.s32 3, %v1383
    %v1385 = vrot.slane %v1368, %v1384
    %v1390 = vmul.f32 %v1358, %v1373
    %v1391 = vmul.f32 %v1359, %v1377
    %v1392 = vmul.f32 %v1360, %v1381
    %v1393 = vmul.f32 %v1366, %v1385
    %s1394 = scalar_lea.vmem %s7, 64
    %v1395 = vld [vmem:[%s1394] sm:$0xff]
    %1397 = vset.pattern.permute.xlu0 0
    %1398 = vperm.xlu0 %1397, %v1395
    %v1399 = vpop.permute.xlu0 %1398
    %v1401 = vmul.f32 %v1399, %v1390
    %v1402 = vmul.f32 %v1399, %v1391
    %v1403 = vmul.f32 %v1399, %v1392
    %v1404 = vmul.f32 %v1399, %v1393
    %v1405 = vadd.f32 %v1309, %v1401
    %v1406 = vadd.f32 %v1310, %v1402
    %v1407 = vadd.f32 %v1311, %v1403
    %v1408 = vadd.f32 %v1312, %v1404
    %v1409 = vld [vmem:[%s6] sm:$0xff]
    %1411 = vset.pattern.permute.xlu0 0
    %1412 = vperm.xlu0 %1411, %v1409
    %v1413 = vpop.permute.xlu0 %1412
    %v1415 = vadd.f32 %v1345, %v1413
    %v1416 = vadd.f32 %v1346, %v1413
    %v1417 = vadd.f32 %v1347, %v1413
    %v1418 = vadd.f32 %v1348, %v1413
    %vm1419 = vcmp.gt.f32.partialorder %v1415, 0.0
    %vm1420 = vcmp.gt.f32.partialorder %v1416, 0.0
    %vm1421 = vcmp.gt.f32.partialorder %v1417, 0.0
    %vm1422 = vcmp.gt.f32.partialorder %v1418, 0.0
    %v1423 = vmin.f32 %v1415, 0.0
    %v1424 = vmin.f32 %v1416, 0.0
    %v1425 = vmin.f32 %v1417, 0.0
    %v1426 = vmin.f32 %v1418, 0.0
    %v1427 = vmul.f32 %v1423, 1.442695
    %v1428 = vpow.pop %v1427
    %v1429 = vmul.f32 %v1424, 1.442695
    %v1430 = vpow.pop %v1429
    %v1431 = vmul.f32 %v1425, 1.442695
    %v1432 = vpow.pop %v1431
    %v1433 = vmul.f32 %v1426, 1.442695
    %v1434 = vpow.pop %v1433
    %v1435 = vsub.f32 %v1428, 1.0
    %v1436 = vsub.f32 %v1430, 1.0
    %v1437 = vsub.f32 %v1432, 1.0
    %v1438 = vsub.f32 %v1434, 1.0
    %v1439 = vmul.f32 %v1435, 1.6732632
    %v1440 = vmul.f32 %v1436, 1.6732632
    %v1441 = vmul.f32 %v1437, 1.6732632
    %v1442 = vmul.f32 %v1438, 1.6732632
    %v1443 = vsel %vm1419, %v1415, %v1439
    %v1444 = vsel %vm1420, %v1416, %v1440
    %v1445 = vsel %vm1421, %v1417, %v1441
    %v1446 = vsel %vm1422, %v1418, %v1442
    %v1447 = vmul.f32 %v1443, 1.050701
    %v1448 = vmul.f32 %v1444, 1.050701
    %v1449 = vmul.f32 %v1445, 1.050701
    %v1450 = vmul.f32 %v1446, 1.050701
    %v1451 = vld [vmem:[%s8] sm:$0xff]
    %1453 = vset.pattern.permute.xlu0 0
    %1454 = vperm.xlu0 %1453, %v1451
    %v1455 = vpop.permute.xlu0 %1454
    %v1457 = vadd.f32 %v1405, %v1455
    %v1458 = vadd.f32 %v1406, %v1455
    %v1459 = vadd.f32 %v1407, %v1455
    %v1460 = vadd.f32 %v1408, %v1455
    %vm1461 = vcmp.gt.f32.partialorder %v1457, 0.0
    %vm1462 = vcmp.gt.f32.partialorder %v1458, 0.0
    %vm1463 = vcmp.gt.f32.partialorder %v1459, 0.0
    %vm1464 = vcmp.gt.f32.partialorder %v1460, 0.0
    %v1465 = vmin.f32 %v1457, 0.0
    %v1466 = vmin.f32 %v1458, 0.0
    %v1467 = vmin.f32 %v1459, 0.0
    %v1468 = vmin.f32 %v1460, 0.0
    %v1469 = vmul.f32 %v1465, 1.442695
    %v1470 = vpow.pop %v1469
    %v1471 = vmul.f32 %v1466, 1.442695
    %v1472 = vpow.pop %v1471
    %v1473 = vmul.f32 %v1467, 1.442695
    %v1474 = vpow.pop %v1473
    %v1475 = vmul.f32 %v1468, 1.442695
    %v1476 = vpow.pop %v1475
    %v1477 = vsub.f32 %v1470, 1.0
    %v1478 = vsub.f32 %v1472, 1.0
    %v1479 = vsub.f32 %v1474, 1.0
    %v1480 = vsub.f32 %v1476, 1.0
    %v1481 = vmul.f32 %v1477, 1.6732632
    %v1482 = vmul.f32 %v1478, 1.6732632
    %v1483 = vmul.f32 %v1479, 1.6732632
    %v1484 = vmul.f32 %v1480, 1.6732632
    %v1485 = vsel %vm1461, %v1457, %v1481
    %v1486 = vsel %vm1462, %v1458, %v1482
    %v1487 = vsel %vm1463, %v1459, %v1483
    %v1488 = vsel %vm1464, %v1460, %v1484
    %v1489 = vmul.f32 %v1485, 1.050701
    %v1490 = vmul.f32 %v1486, 1.050701
    %v1491 = vmul.f32 %v1487, 1.050701
    %v1492 = vmul.f32 %v1488, 1.050701
    %v1493 = vld [vmem:[%s9] sm:$0xff]
    %v1494 = vadd.f32 %v606, %v1447
    %v1495 = vadd.f32 %v607, %v1448
    %v1496 = vadd.f32 %v608, %v1449
    %v1497 = vadd.f32 %v609, %v1450
    %v1498 = vadd.f32 %v1494, %v1489
    %v1499 = vadd.f32 %v1495, %v1490
    %v1500 = vadd.f32 %v1496, %v1491
    %v1501 = vadd.f32 %v1497, %v1492
    %1503 = vset.pattern.permute.xlu0 0
    %1504 = vperm.xlu0 %1503, %v1493
    %v1505 = vpop.permute.xlu0 %1504
    %v1507 = vmul.f32 %v1505, %v1498
    %v1508 = vmul.f32 %v1505, %v1499
    %v1509 = vmul.f32 %v1505, %v1500
    %v1510 = vmul.f32 %v1505, %v1501
    %v1511 = vld [vmem:[%s10] sm:$0xff]
    %1513 = vset.pattern.permute.xlu0 0
    %1514 = vperm.xlu0 %1513, %v1511
    %v1515 = vpop.permute.xlu0 %1514
    %v1517 = vadd.f32 %v1507, %v1515
    %v1518 = vadd.f32 %v1508, %v1515
    %v1519 = vadd.f32 %v1509, %v1515
    %v1520 = vadd.f32 %v1510, %v1515
    %vm1521 = vcmp.gt.f32.partialorder %v1517, 0.0
    %vm1522 = vcmp.gt.f32.partialorder %v1518, 0.0
    %vm1523 = vcmp.gt.f32.partialorder %v1519, 0.0
    %vm1524 = vcmp.gt.f32.partialorder %v1520, 0.0
    %v1525 = vmin.f32 %v1517, 0.0
    %v1526 = vmin.f32 %v1518, 0.0
    %v1527 = vmin.f32 %v1519, 0.0
    %v1528 = vmin.f32 %v1520, 0.0
    %v1529 = vmul.f32 %v1525, 1.442695
    %v1530 = vpow.pop %v1529
    %v1531 = vmul.f32 %v1526, 1.442695
    %v1532 = vpow.pop %v1531
    %v1533 = vmul.f32 %v1527, 1.442695
    %v1534 = vpow.pop %v1533
    %v1535 = vmul.f32 %v1528, 1.442695
    %v1536 = vpow.pop %v1535
    %v1537 = vsub.f32 %v1530, 1.0
    %v1538 = vsub.f32 %v1532, 1.0
    %v1539 = vsub.f32 %v1534, 1.0
    %v1540 = vsub.f32 %v1536, 1.0
    %v1541 = vmul.f32 %v1537, 1.6732632
    %v1542 = vmul.f32 %v1538, 1.6732632
    %v1543 = vmul.f32 %v1539, 1.6732632
    %v1544 = vmul.f32 %v1540, 1.6732632
    %v1545 = vsel %vm1521, %v1517, %v1541
    %v1546 = vsel %vm1522, %v1518, %v1542
    %v1547 = vsel %vm1523, %v1519, %v1543
    %v1548 = vsel %vm1524, %v1520, %v1544
    %v1549 = vmul.f32 %v1545, 1.050701
    %v1550 = vmul.f32 %v1546, 1.050701
    %v1551 = vmul.f32 %v1547, 1.050701
    %v1552 = vmul.f32 %v1548, 1.050701
    %v1553 = vld [vmem:[%s11] sm:$0xff]
    %v1554 = vld [vmem:[%s11 + $0x8] sm:$0xff]
    %v1555 = vld [vmem:[%s11 + $0x10] sm:$0xff]
    %v1556 = vld [vmem:[%s11 + $0x18] sm:$0xff]
    %vm1557 = vcmask 195584
    %v1559 = vsel %vm1557, %v1553, 0
    %v1562 = vsel %vm1557, %v1554, 0
    %v1565 = vsel %vm1557, %v1555, 0
    %v1568 = vsel %vm1557, %v1556, 0
    %1570 = vmatprep.subr.mxu0 %v55
    %1571 = vmatpush1.msra.mxu0 %v54
    %1572 = vmatprep.subr.mxu0 %v59
    %1573 = vmatpush1.msra.mxu0 %v58
    %1574 = vmatprep.subr.mxu0 %v1550
    %1575 = vmatpush1.msra.mxu0 %v1549
    %1576 = vmatprep.subr.mxu0 0.0
    %1577 = vmatpush1.msra.mxu0 0.0
    %1578 = vmatprep.subr.mxu0 0.0
    %1579 = vmatpush1.msra.mxu0 0.0
    %1580 = vmatprep.subr.mxu0 0.0
    %1581 = vmatpush1.msra.mxu0 0.0
    %1582 = vmatprep.subr.mxu0 0.0
    %1583 = vmatpush1.msra.mxu0 0.0
    %1584 = vmatprep.subr.mxu0 0.0
    %1585 = vmatpush1.msra.mxu0 0.0
    %1586 = vmatprep.subr.mxu0 0.0
    %1587 = vmatpush1.msra.mxu0 0.0
    %1588 = vmatprep.subr.mxu0 0.0
    %1589 = vmatpush1.msra.mxu0 0.0
    %1590 = vmatprep.subr.mxu0 0.0
    %1591 = vmatpush1.msra.mxu0 0.0
    %1592 = vmatprep.subr.mxu0 0.0
    %1593 = vmatpush1.msra.mxu0 0.0
    %1594 = vmatprep.subr.mxu0 0.0
    %1595 = vmatpush1.msra.mxu0 0.0
    %1596 = vmatprep.subr.mxu0 0.0
    %1597 = vmatpush1.msra.mxu0 0.0
    %1598 = vmatprep.subr.mxu0 0.0
    %1599 = vmatpush1.msra.mxu0 0.0
    %1600 = vmatprep.subr.mxu0 0.0
    %1601 = vmatpush1.msra.mxu0 0.0
    %1602 = vmatprep.subr.mxu0 0.0
    %1603 = vmatpush1.msra.mxu0 0.0
    %1604 = vmatprep.subr.mxu0 0.0
    %1605 = vmatpush1.msra.mxu0 0.0
    %1606 = vmatprep.subr.mxu0 0.0
    %1607 = vmatpush1.msra.mxu0 0.0
    %1608 = vmatprep.subr.mxu0 0.0
    %1609 = vmatpush1.msra.mxu0 0.0
    %1610 = vmatprep.subr.mxu0 0.0
    %1611 = vmatpush1.msra.mxu0 0.0
    %1612 = vmatprep.subr.mxu0 0.0
    %1613 = vmatpush1.msra.mxu0 0.0
    %1614 = vmatprep.subr.mxu0 0.0
    %1615 = vmatpush1.msra.mxu0 0.0
    %1616 = vmatprep.subr.mxu0 0.0
    %1617 = vmatpush1.msra.mxu0 0.0
    %1618 = vmatprep.subr.mxu0 0.0
    %1619 = vmatpush1.msra.mxu0 0.0
    %1620 = vmatprep.subr.mxu0 0.0
    %1621 = vmatpush1.msra.mxu0 0.0
    %1622 = vmatprep.subr.mxu0 0.0
    %1623 = vmatpush1.msra.mxu0 0.0
    %1624 = vmatprep.subr.mxu0 0.0
    %1625 = vmatpush1.msra.mxu0 0.0
    %1626 = vmatprep.subr.mxu0 0.0
    %1627 = vmatpush1.msra.mxu0 0.0
    %1628 = vmatprep.subr.mxu0 0.0
    %1629 = vmatpush1.msra.mxu0 0.0
    %1630 = vmatprep.subr.mxu0 0.0
    %1631 = vmatpush1.msra.mxu0 0.0
    %1632 = vmatprep.subr.mxu0 0.0
    %1633 = vmatpush1.msra.mxu0 0.0
    %1634 = vmatprep.mubr.f32.mxu0 0.0
    %1635 = vmatmul.mubr.f32.gmra.mrb[0].mxu0 %v1559
    %v1636 = vpop.f32.mrb[0].mxu0
    %v1637 = vadd.f32 0.0, %v1636
    %v1638 = vpop.f32.mrb[0].mxu0
    %v1639 = vadd.f32 0.0, %v1638
    %1640 = vmatprep.mubr.f32.mxu0 0.0
    %1641 = vmatmul.mubr.f32.gmra.mrb[0].mxu0 %v1562
    %v1642 = vpop.f32.mrb[0].mxu0
    %v1643 = vadd.f32 0.0, %v1642
    %v1644 = vpop.f32.mrb[0].mxu0
    %v1645 = vadd.f32 0.0, %v1644
    %1646 = vmatprep.mubr.f32.mxu0 0.0
    %1647 = vmatmul.mubr.f32.gmra.mrb[0].mxu0 %v1565
    %v1648 = vpop.f32.mrb[0].mxu0
    %v1649 = vadd.f32 0.0, %v1648
    %v1650 = vpop.f32.mrb[0].mxu0
    %v1651 = vadd.f32 0.0, %v1650
    %1652 = vmatprep.mubr.f32.mxu0 0.0
    %1653 = vmatmul.mubr.f32.gmra.mrb[0].mxu0 %v1568
    %v1654 = vpop.f32.mrb[0].mxu0
    %v1655 = vadd.f32 0.0, %v1654
    %v1656 = vpop.f32.mrb[0].mxu0
    %v1657 = vadd.f32 0.0, %v1656
    %1658 = vdwg.mxu0
    %1659 = vmatprep.subr.mxu0 %v57
    %1660 = vmatpush1.msra.mxu0 %v56
    %1661 = vmatprep.subr.mxu0 %v61
    %1662 = vmatpush1.msra.mxu0 %v60
    %1663 = vmatprep.subr.mxu0 %v1552
    %1664 = vmatpush1.msra.mxu0 %v1551
    %1665 = vmatprep.subr.mxu0 0.0
    %1666 = vmatpush1.msra.mxu0 0.0
    %1667 = vmatprep.subr.mxu0 0.0
    %1668 = vmatpush1.msra.mxu0 0.0
    %1669 = vmatprep.subr.mxu0 0.0
    %1670 = vmatpush1.msra.mxu0 0.0
    %1671 = vmatprep.subr.mxu0 0.0
    %1672 = vmatpush1.msra.mxu0 0.0
    %1673 = vmatprep.subr.mxu0 0.0
    %1674 = vmatpush1.msra.mxu0 0.0
    %1675 = vmatprep.subr.mxu0 0.0
    %1676 = vmatpush1.msra.mxu0 0.0
    %1677 = vmatprep.subr.mxu0 0.0
    %1678 = vmatpush1.msra.mxu0 0.0
    %1679 = vmatprep.subr.mxu0 0.0
    %1680 = vmatpush1.msra.mxu0 0.0
    %1681 = vmatprep.subr.mxu0 0.0
    %1682 = vmatpush1.msra.mxu0 0.0
    %1683 = vmatprep.subr.mxu0 0.0
    %1684 = vmatpush1.msra.mxu0 0.0
    %1685 = vmatprep.subr.mxu0 0.0
    %1686 = vmatpush1.msra.mxu0 0.0
    %1687 = vmatprep.subr.mxu0 0.0
    %1688 = vmatpush1.msra.mxu0 0.0
    %1689 = vmatprep.subr.mxu0 0.0
    %1690 = vmatpush1.msra.mxu0 0.0
    %1691 = vmatprep.subr.mxu0 0.0
    %1692 = vmatpush1.msra.mxu0 0.0
    %1693 = vmatprep.subr.mxu0 0.0
    %1694 = vmatpush1.msra.mxu0 0.0
    %1695 = vmatprep.subr.mxu0 0.0
    %1696 = vmatpush1.msra.mxu0 0.0
    %1697 = vmatprep.subr.mxu0 0.0
    %1698 = vmatpush1.msra.mxu0 0.0
    %1699 = vmatprep.subr.mxu0 0.0
    %1700 = vmatpush1.msra.mxu0 0.0
    %1701 = vmatprep.subr.mxu0 0.0
    %1702 = vmatpush1.msra.mxu0 0.0
    %1703 = vmatprep.subr.mxu0 0.0
    %1704 = vmatpush1.msra.mxu0 0.0
    %1705 = vmatprep.subr.mxu0 0.0
    %1706 = vmatpush1.msra.mxu0 0.0
    %1707 = vmatprep.subr.mxu0 0.0
    %1708 = vmatpush1.msra.mxu0 0.0
    %1709 = vmatprep.subr.mxu0 0.0
    %1710 = vmatpush1.msra.mxu0 0.0
    %1711 = vmatprep.subr.mxu0 0.0
    %1712 = vmatpush1.msra.mxu0 0.0
    %1713 = vmatprep.subr.mxu0 0.0
    %1714 = vmatpush1.msra.mxu0 0.0
    %1715 = vmatprep.subr.mxu0 0.0
    %1716 = vmatpush1.msra.mxu0 0.0
    %1717 = vmatprep.subr.mxu0 0.0
    %1718 = vmatpush1.msra.mxu0 0.0
    %1719 = vmatprep.subr.mxu0 0.0
    %1720 = vmatpush1.msra.mxu0 0.0
    %1721 = vmatprep.subr.mxu0 0.0
    %1722 = vmatpush1.msra.mxu0 0.0
    %1723 = vmatprep.mubr.f32.mxu0 0.0
    %1724 = vmatmul.mubr.f32.gmra.mrb[0].mxu0 %v1559
    %v1725 = vpop.f32.mrb[0].mxu0
    %v1726 = vadd.f32 0.0, %v1725
    %v1727 = vpop.f32.mrb[0].mxu0
    %v1728 = vadd.f32 0.0, %v1727
    %1729 = vmatprep.mubr.f32.mxu0 0.0
    %1730 = vmatmul.mubr.f32.gmra.mrb[0].mxu0 %v1562
    %v1731 = vpop.f32.mrb[0].mxu0
    %v1732 = vadd.f32 0.0, %v1731
    %v1733 = vpop.f32.mrb[0].mxu0
    %v1734 = vadd.f32 0.0, %v1733
    %1735 = vmatprep.mubr.f32.mxu0 0.0
    %1736 = vmatmul.mubr.f32.gmra.mrb[0].mxu0 %v1565
    %v1737 = vpop.f32.mrb[0].mxu0
    %v1738 = vadd.f32 0.0, %v1737
    %v1739 = vpop.f32.mrb[0].mxu0
    %v1740 = vadd.f32 0.0, %v1739
    %1741 = vmatprep.mubr.f32.mxu0 0.0
    %1742 = vmatmul.mubr.f32.gmra.mrb[0].mxu0 %v1568
    %v1743 = vpop.f32.mrb[0].mxu0
    %v1744 = vadd.f32 0.0, %v1743
    %v1745 = vpop.f32.mrb[0].mxu0
    %v1746 = vadd.f32 0.0, %v1745
    %1747 = vdwg.mxu0
    %v1748 = vld [vmem:[%s12] sm:$0xff]
    %v1749 = vld [vmem:[%s12 + $0x8] sm:$0xff]
    %1751 = vset.pattern.permute.xlu0 0
    %1752 = vperm.xlu0 %1751, %v1748
    %v1753 = vpop.permute.xlu0 %1752
    %1756 = vset.pattern.permute.xlu0 0
    %1757 = vperm.xlu0 %1756, %v1749
    %v1758 = vpop.permute.xlu0 %1757
    %v1760 = vadd.f32 %v1637, %v1753
    %v1761 = vadd.f32 %v1639, %v1753
    %v1762 = vadd.f32 %v1726, %v1753
    %v1763 = vadd.f32 %v1728, %v1753
    %v1764 = vadd.f32 %v1643, %v1758
    %v1765 = vadd.f32 %v1645, %v1758
    %v1766 = vadd.f32 %v1732, %v1758
    %v1767 = vadd.f32 %v1734, %v1758
    %vm1768 = vcmp.gt.f32.partialorder %v1760, 0.0
    %vm1769 = vcmp.gt.f32.partialorder %v1761, 0.0
    %vm1770 = vcmp.gt.f32.partialorder %v1762, 0.0
    %vm1771 = vcmp.gt.f32.partialorder %v1763, 0.0
    %vm1772 = vcmp.gt.f32.partialorder %v1764, 0.0
    %vm1773 = vcmp.gt.f32.partialorder %v1765, 0.0
    %vm1774 = vcmp.gt.f32.partialorder %v1766, 0.0
    %vm1775 = vcmp.gt.f32.partialorder %v1767, 0.0
    %v1776 = vmin.f32 %v1760, 0.0
    %v1777 = vmin.f32 %v1761, 0.0
    %v1778 = vmin.f32 %v1762, 0.0
    %v1779 = vmin.f32 %v1763, 0.0
    %v1780 = vmin.f32 %v1764, 0.0
    %v1781 = vmin.f32 %v1765, 0.0
    %v1782 = vmin.f32 %v1766, 0.0
    %v1783 = vmin.f32 %v1767, 0.0
    %v1784 = vmul.f32 %v1776, 1.442695
    %v1785 = vpow.pop %v1784
    %v1786 = vmul.f32 %v1777, 1.442695
    %v1787 = vpow.pop %v1786
    %v1788 = vmul.f32 %v1778, 1.442695
    %v1789 = vpow.pop %v1788
    %v1790 = vmul.f32 %v1779, 1.442695
    %v1791 = vpow.pop %v1790
    %v1792 = vmul.f32 %v1780, 1.442695
    %v1793 = vpow.pop %v1792
    %v1794 = vmul.f32 %v1781, 1.442695
    %v1795 = vpow.pop %v1794
    %v1796 = vmul.f32 %v1782, 1.442695
    %v1797 = vpow.pop %v1796
    %v1798 = vmul.f32 %v1783, 1.442695
    %v1799 = vpow.pop %v1798
    %v1800 = vsub.f32 %v1785, 1.0
    %v1801 = vsub.f32 %v1787, 1.0
    %v1802 = vsub.f32 %v1789, 1.0
    %v1803 = vsub.f32 %v1791, 1.0
    %v1804 = vsub.f32 %v1793, 1.0
    %v1805 = vsub.f32 %v1795, 1.0
    %v1806 = vsub.f32 %v1797, 1.0
    %v1807 = vsub.f32 %v1799, 1.0
    %v1808 = vmul.f32 %v1800, 1.6732632
    %v1809 = vmul.f32 %v1801, 1.6732632
    %v1810 = vmul.f32 %v1802, 1.6732632
    %v1811 = vmul.f32 %v1803, 1.6732632
    %v1812 = vmul.f32 %v1804, 1.6732632
    %v1813 = vmul.f32 %v1805, 1.6732632
    %v1814 = vmul.f32 %v1806, 1.6732632
    %v1815 = vmul.f32 %v1807, 1.6732632
    %v1816 = vsel %vm1768, %v1760, %v1808
    %v1817 = vsel %vm1769, %v1761, %v1809
    %v1818 = vsel %vm1770, %v1762, %v1810
    %v1819 = vsel %vm1771, %v1763, %v1811
    %v1820 = vsel %vm1772, %v1764, %v1812
    %v1821 = vsel %vm1773, %v1765, %v1813
    %v1822 = vsel %vm1774, %v1766, %v1814
    %v1823 = vsel %vm1775, %v1767, %v1815
    %v1824 = vmul.f32 %v1816, 1.050701
    %v1825 = vmul.f32 %v1817, 1.050701
    %v1826 = vmul.f32 %v1818, 1.050701
    %v1827 = vmul.f32 %v1819, 1.050701
    %v1828 = vmul.f32 %v1820, 1.050701
    %v1829 = vmul.f32 %v1821, 1.050701
    %v1830 = vmul.f32 %v1822, 1.050701
    %v1831 = vmul.f32 %v1823, 1.050701
    %v1832 = vld [vmem:[%s13] sm:$0xff]
    %v1833 = vld [vmem:[%s13 + $0x8] sm:$0xff]
    %1835 = vset.pattern.permute.xlu0 0
    %1836 = vperm.xlu0 %1835, %v1832
    %v1837 = vpop.permute.xlu0 %1836
    %1840 = vset.pattern.permute.xlu0 0
    %1841 = vperm.xlu0 %1840, %v1833
    %v1842 = vpop.permute.xlu0 %1841
    %v1844 = vadd.f32 %v1649, %v1837
    %v1845 = vadd.f32 %v1651, %v1837
    %v1846 = vadd.f32 %v1738, %v1837
    %v1847 = vadd.f32 %v1740, %v1837
    %v1848 = vadd.f32 %v1655, %v1842
    %v1849 = vadd.f32 %v1657, %v1842
    %v1850 = vadd.f32 %v1744, %v1842
    %v1851 = vadd.f32 %v1746, %v1842
    %v1852 = vadd.f32 %v1824, %v1844
    %v1853 = vadd.f32 %v1825, %v1845
    %v1854 = vadd.f32 %v1826, %v1846
    %v1855 = vadd.f32 %v1827, %v1847
    %v1856 = vadd.f32 %v1828, %v1848
    %v1857 = vadd.f32 %v1829, %v1849
    %v1858 = vadd.f32 %v1830, %v1850
    %v1859 = vadd.f32 %v1831, %v1851
    %v1860 = vmax.f32 %v1852, 0.0
    %v1861 = vmax.f32 %v1853, 0.0
    %v1862 = vmax.f32 %v1854, 0.0
    %v1863 = vmax.f32 %v1855, 0.0
    %v1864 = vmax.f32 %v1856, 0.0
    %v1865 = vmax.f32 %v1857, 0.0
    %v1866 = vmax.f32 %v1858, 0.0
    %v1867 = vmax.f32 %v1859, 0.0
    %v1868 = vld [vmem:[%s14] sm:$0xff]
    %v1869 = vld [vmem:[%s14 + $0x8] sm:$0xff]
    %v1870 = vld [vmem:[%s15] sm:$0xff]
    %v1871 = vld [vmem:[%s15 + $0x8] sm:$0xff]
    %v1872 = vadd.f32 %v1860, %v1861
    %1873 = vadd.xlane.f32.xlu0 %v1872
    %v1874 = vpop.xlane.xlu0 %1873
    %v1875 = vadd.f32 %v1864, %v1865
    %1876 = vadd.xlane.f32.xlu0 %v1875
    %v1877 = vpop.xlane.xlu0 %1876
    %v1878 = vmul.f32 %v1874, 0.00390625
    %v1879 = vmul.f32 %v1877, 0.00390625
    %v1880 = vmul.f32 %v1868, %v1878
    %v1881 = vmul.f32 %v1869, %v1879
    %vm1882 = vcmask 31744
    %v1883 = vsel %vm1882, %v1880, 0.0
    %v1884 = vsel %vm1882, %v1881, 0.0
    %v1885 = vadd.f32 %v1883, %v1884
    %v1886 = vrot.slane %v1885, 4
    %v1887 = vadd.f32 %v1885, %v1886
    %v1888 = vrot.slane %v1887, 2
    %v1889 = vadd.f32 %v1887, %v1888
    %v1890 = vrot.slane %v1889, 1
    %v1891 = vadd.f32 %v1889, %v1890
    %v1892 = vmax.f32 %v1891, 0.0
    %v1893 = vmul.f32 %v1870, %v1892
    %v1894 = vmul.f32 %v1871, %v1892
    %v1895 = vsel %vm1882, %v1893, 0.0
    %1896 = vadd.xlane.f32.xlu0 %v1895
    %v1897 = vpop.xlane.xlu0 %1896
    %v1898 = vsel %vm1882, %v1894, 0.0
    %1899 = vadd.xlane.f32.xlu0 %v1898
    %v1900 = vpop.xlane.xlu0 %1899
    %v1901 = vsub.f32 0.0, %v1897
    %v1902 = vsub.f32 0.0, %v1900
    %v1903 = vmul.f32 %v1901, 1.442695
    %v1904 = vpow.pop %v1903
    %v1905 = vmul.f32 %v1902, 1.442695
    %v1906 = vpow.pop %v1905
    %v1907 = vadd.f32 %v1904, 1.0
    %v1908 = vadd.f32 %v1906, 1.0
    %v1909 = vrcp.pop %v1907
    %v1910 = vmul.f32 1.0, %v1909
    %v1911 = vrcp.pop %v1908
    %v1912 = vmul.f32 1.0, %v1911
    %v1913 = vmul.f32 %v1860, %v1910
    %v1914 = vmul.f32 %v1861, %v1910
    %v1915 = vmul.f32 %v1864, %v1912
    %v1916 = vmul.f32 %v1865, %v1912
    %1917 = vst [vmem:[#allocation2] sm:$0xff] %v1913
    %1918 = vst [vmem:[#allocation2 + $0x8] sm:$0xff] %v1914
    %1919 = vst [vmem:[#allocation2 + $0x20] sm:$0xff] %v1915
    %1920 = vst [vmem:[#allocation2 + $0x28] sm:$0xff] %v1916
    %v1921 = vadd.f32 %v1862, %v1863
    %1922 = vadd.xlane.f32.xlu0 %v1921
    %v1923 = vpop.xlane.xlu0 %1922
    %v1924 = vadd.f32 %v1866, %v1867
    %1925 = vadd.xlane.f32.xlu0 %v1924
    %v1926 = vpop.xlane.xlu0 %1925
    %v1927 = vmul.f32 %v1923, 0.00390625
    %v1928 = vmul.f32 %v1926, 0.00390625
    %v1929 = vmul.f32 %v1868, %v1927
    %v1930 = vmul.f32 %v1869, %v1928
    %v1931 = vsel %vm1882, %v1929, 0.0
    %v1932 = vsel %vm1882, %v1930, 0.0
    %v1933 = vadd.f32 %v1931, %v1932
    %v1934 = vrot.slane %v1933, 4
    %v1935 = vadd.f32 %v1933, %v1934
    %v1936 = vrot.slane %v1935, 2
    %v1937 = vadd.f32 %v1935, %v1936
    %v1938 = vrot.slane %v1937, 1
    %v1939 = vadd.f32 %v1937, %v1938
    %v1940 = vmax.f32 %v1939, 0.0
    %v1941 = vmul.f32 %v1870, %v1940
    %v1942 = vmul.f32 %v1871, %v1940
    %v1943 = vsel %vm1882, %v1941, 0.0
    %1944 = vadd.xlane.f32.xlu0 %v1943
    %v1945 = vpop.xlane.xlu0 %1944
    %v1946 = vsel %vm1882, %v1942, 0.0
    %1947 = vadd.xlane.f32.xlu0 %v1946
    %v1948 = vpop.xlane.xlu0 %1947
    %v1949 = vsub.f32 0.0, %v1945
    %v1950 = vsub.f32 0.0, %v1948
    %v1951 = vmul.f32 %v1949, 1.442695
    %v1952 = vpow.pop %v1951
    %v1953 = vmul.f32 %v1950, 1.442695
    %v1954 = vpow.pop %v1953
    %v1955 = vadd.f32 %v1952, 1.0
    %v1956 = vadd.f32 %v1954, 1.0
    %v1957 = vrcp.pop %v1955
    %v1958 = vmul.f32 1.0, %v1957
    %v1959 = vrcp.pop %v1956
    %v1960 = vmul.f32 1.0, %v1959
    %v1961 = vmul.f32 %v1862, %v1958
    %v1962 = vmul.f32 %v1863, %v1958
    %v1963 = vmul.f32 %v1866, %v1960
    %v1964 = vmul.f32 %v1867, %v1960
    %1965 = vst [vmem:[#allocation2 + $0x10] sm:$0xff] %v1961
    %1966 = vst [vmem:[#allocation2 + $0x18] sm:$0xff] %v1962
    %1967 = vst [vmem:[#allocation2 + $0x30] sm:$0xff] %v1963
    %1968 = vst [vmem:[#allocation2 + $0x38] sm:$0xff] %v1964
    // Predicated region
    $region66: #{tpu_custom_call.1} parent=1 // pred_check
      _
    $region67: #{tpu_custom_call.1} parent=1 // pred_check_branch
      %1970 = sbr.rel (0) target = $region69
    $region68: #{tpu_custom_call.1} parent=1 // pred_region
      %s1972 = ssub.s32 1024, 1024
      %1973 = vsyncadd [#allocation3], %s1972
      %s1974 = sshll.u32 [#allocation2], 4
      %s1975 = int_to_ptr.vmem [resolvable:$true] %s1974
      %1980 = dma.vmem_to_hbm [thread:$0]  %s1975, 1024, %s16, [#allocation3], 512, 512, 32
    $region69: #{tpu_custom_call.1} parent=1 // pred_fallthru
      _
    // Predicated region
    $region70: #{tpu_custom_call.1} parent=1 // pred_check
      _
    $region71: #{tpu_custom_call.1} parent=1 // pred_check_branch
      %1982 = sbr.rel (0) target = $region73
    $region72: #{tpu_custom_call.1} parent=1 // pred_region
      %1983 = dma.done [#allocation3], 1024
    $region73: #{tpu_custom_call.1} parent=1 // pred_fallthru
      _
    %1984 = vsyncpa [#allocation3], 1

</llo_original>
